<compile_context>
chip_gen: v7x
topology: tpu7x:2x2x1
jax: 0.10.0
libtpu: 0.0.40
codegen_flags: <defaults>
</compile_context>

<pallas_src>
import functools

import jax
import jax.numpy as jnp
from jax import lax
from jax.experimental import pallas as pl
from jax.experimental.pallas import tpu as pltpu

VMEM_SPEC = pl.BlockSpec(memory_space=pltpu.MemorySpace.VMEM)


# ----------------------------------------------------------------------------
# In-kernel helper: InferentialModule
#   e    = softmax_over_batch( P(tanh(W(ha*hb))) )
#   hb_d = ha * e
#   out  = LayerNorm( relu( Wb(cat[hb, hb_d, hb-hb_d, hb*hb_d]) ) )
# ----------------------------------------------------------------------------
def _inferential(ha, hb, w, p, wb, bbias, gamma, beta, *, B, S, H):
    t = jnp.tanh(jnp.dot(ha * hb, w, preferred_element_type=jnp.float32))   # (B*S, K)
    logits = jnp.sum(t * p, axis=1, keepdims=True)                          # (B*S, 1)

    # F.softmax with no dim on a (B, S, 1) tensor => softmax over dim 0 (batch).
    # Global-max shift (softmax-invariant); denominator = sum over batch dim.
    ex = jnp.exp(logits - jnp.max(logits))                                  # (B*S, 1)
    ex3 = ex.reshape(B, S, 1)
    den = jnp.sum(ex3, axis=0, keepdims=True)                               # (1, S, 1)
    e = (ex3 / den).reshape(B * S, 1)

    hb_d = ha * e
    # One K = 4H (=128) matmul fills the MXU depth; the lane concat of 32-wide
    # pieces is cheap XLU work.
    feat = jnp.concatenate([hb, hb_d, hb - hb_d, hb * hb_d], axis=-1)       # (B*S, 4H)
    z = jnp.maximum(jnp.dot(feat, wb, preferred_element_type=jnp.float32) + bbias, 0.0)

    mu = jnp.mean(z, axis=-1, keepdims=True)
    var = jnp.mean((z - mu) ** 2, axis=-1, keepdims=True)
    return (z - mu) * lax.rsqrt(var + 1e-5) * gamma + beta


# ----------------------------------------------------------------------------
# The ONE fused ADIN kernel: encoder linear+ReLU -> N AsyncInfer blocks -> head.
# ----------------------------------------------------------------------------
def _adin_kernel(emb_ref, wtr_ref, btr_ref,
                 w1_ref, p1_ref, wb1_ref, bb1_ref, g1_ref, be1_ref,
                 w2_ref, p2_ref, wb2_ref, bb2_ref, g2_ref, be2_ref,
                 wihf_ref, whhf_ref, bf_ref, wihb_ref, whhb_ref, bbk_ref,
                 wr_ref, br_ref, wv_ref, bv_ref,
                 y_ref,
                 vp_buf, vq_buf, xf_scr, xb_scr,
                 *, B, S, H, hid, N):
    BS = B * S
    T = B            # nn.LSTM quirk: batch_first=False -> original batch dim is TIME
    S2 = 2 * S       # q-stream + p-stream stacked along the LSTM batch axis

    # ---- SentenceEncoder.translate + ReLU for BOTH sentences (rows stacked) ----
    enc = jnp.dot(emb_ref[...], wtr_ref[...], preferred_element_type=jnp.float32)
    enc = jnp.maximum(enc + btr_ref[...], 0.0)                               # (2*B*S, H)
    vp = enc[0:BS, :]          # x0_enc  (Vp)
    vq = enc[BS:2 * BS, :]     # x1_enc  (Vq)

    # ---- N AsyncInfer blocks (static unroll; activations never leave VMEM) ----
    for n in range(N):
        vq_hat = _inferential(vp, vq, w1_ref[n], p1_ref[n], wb1_ref[n],
                              bb1_ref[n], g1_ref[n], be1_ref[n], B=B, S=S, H=H)
        vp_hat = _inferential(vq_hat, vp, w2_ref[n], p2_ref[n], wb2_ref[n],
                              bb2_ref[n], g2_ref[n], be2_ref[n], B=B, S=S, H=H)

        # Time-major interleave: rows [q_t | p_t] contiguous for every timestep t.
        z1 = jnp.concatenate([vq.reshape(B, S, H), vp.reshape(B, S, H)],
                             axis=1).reshape(2 * BS, H)
        z2 = jnp.concatenate([vq_hat.reshape(B, S, H), vp_hat.reshape(B, S, H)],
                             axis=1).reshape(2 * BS, H)

        # LSTM x-side pre-activations: once per direction, both streams at once.
        wihf = wihf_ref[n]
        wihb = wihb_ref[n]
        xf_scr[...] = (jnp.dot(z1, wihf[0:H, :], preferred_element_type=jnp.float32)
                       + jnp.dot(z2, wihf[H:2 * H, :], preferred_element_type=jnp.float32)
                       + bf_ref[n])
        xb_scr[...] = (jnp.dot(z1, wihb[0:H, :], preferred_element_type=jnp.float32)
                       + jnp.dot(z2, wihb[H:2 * H, :], preferred_element_type=jnp.float32)
                       + bbk_ref[n])

        whhf = whhf_ref[n]
        whhb = whhb_ref[n]

        def cell(gx, h, c, whh):
            # Gate columns stored as [i | f | o | g]: 1 sigmoid slice + 1 tanh slice.
            gates = gx + jnp.dot(h, whh, preferred_element_type=jnp.float32)
            sig = jax.nn.sigmoid(gates[:, 0:3 * hid])
            g = jnp.tanh(gates[:, 3 * hid:4 * hid])
            i = sig[:, 0:hid]
            f = sig[:, hid:2 * hid]
            o = sig[:, 2 * hid:3 * hid]
            c_new = f * c + i * g
            return o * jnp.tanh(c_new), c_new

        def step(k, carry):
            h_f, c_f, h_b, c_b = carry
            tf = k
            tb = T - 1 - k
            rf = pl.multiple_of(tf * S2, S2)
            rb = pl.multiple_of(tb * S2, S2)
            h_f, c_f = cell(xf_scr[pl.ds(rf, S2), :], h_f, c_f, whhf)
            h_b, c_b = cell(xb_scr[pl.ds(rb, S2), :], h_b, c_b, whhb)
            of = pl.multiple_of(tf * S, S)
            ob = pl.multiple_of(tb * S, S)
            vq_buf[pl.ds(of, S), 0:hid] = h_f[0:S, :]      # fwd half, q stream
            vp_buf[pl.ds(of, S), 0:hid] = h_f[S:S2, :]     # fwd half, p stream
            vq_buf[pl.ds(ob, S), hid:H] = h_b[0:S, :]      # bwd half, q stream
            vp_buf[pl.ds(ob, S), hid:H] = h_b[S:S2, :]     # bwd half, p stream
            return h_f, c_f, h_b, c_b

        z0 = jnp.zeros((S2, hid), jnp.float32)
        lax.fori_loop(0, T, step, (z0, z0, z0, z0), unroll=True)

        vp = vp_buf[...]       # Vp_new
        vq = vq_buf[...]       # Vq_new

    # ---- head: pool over seq axis, lane-concat to 8H (=256), two matmuls ----
    vp3 = vp.reshape(B, S, H)
    vq3 = vq.reshape(B, S, H)
    x0n = jnp.concatenate([jnp.mean(vp3, axis=1), jnp.max(vp3, axis=1)], axis=-1)  # (B, 2H)
    x1n = jnp.concatenate([jnp.mean(vq3, axis=1), jnp.max(vq3, axis=1)], axis=-1)
    r = jnp.concatenate([x0n, x1n, x0n - x1n, x0n * x1n], axis=-1)                 # (B, 8H)
    v = jnp.maximum(jnp.dot(r, wr_ref[...], preferred_element_type=jnp.float32)
                    + br_ref[...], 0.0)
    y_ref[...] = jnp.dot(v, wv_ref[...], preferred_element_type=jnp.float32) + bv_ref[...]


# ----------------------------------------------------------------------------
# Wrapper: embedding gather in plain JAX, everything else in the fused kernel.
# ----------------------------------------------------------------------------
def adin_forward(x0, x1, params):
    B, S = x0.shape
    enc = params["encoder"]
    blk = params["blocks"]
    hd = params["head"]

    # TODO(synk): embedding lookup is a plain-JAX gather (no clean tiled Pallas
    # equivalent at this size); dropout = identity, char-CNN path unused.
    emb0 = jnp.take(enc["embedding"], x0, axis=0).reshape(B * S, -1)
    emb1 = jnp.take(enc["embedding"], x1, axis=0).reshape(B * S, -1)
    emb = jnp.concatenate([emb0, emb1], axis=0)                  # (2*B*S, E)

    H = enc["w_tr"].shape[1]
    hid = H // 2
    N = blk["W1"].shape[0]

    kern = functools.partial(_adin_kernel, B=B, S=S, H=H, hid=hid, N=N)
    return pl.pallas_call(
        kern,
        out_shape=jax.ShapeDtypeStruct((B, 3), jnp.float32),
        in_specs=[VMEM_SPEC] * 25,
        out_specs=VMEM_SPEC,
        scratch_shapes=[
            pltpu.VMEM((B * S, H), jnp.float32),       # vp_buf (block output)
            pltpu.VMEM((B * S, H), jnp.float32),       # vq_buf (block output)
            pltpu.VMEM((2 * B * S, 2 * H), jnp.float32),  # xf_scr (fwd pre-acts)
            pltpu.VMEM((2 * B * S, 2 * H), jnp.float32),  # xb_scr (bwd pre-acts)
        ],
    )(emb, enc["w_tr"], enc["b_tr"],
      blk["W1"], blk["P1"], blk["Wb1"], blk["bb1"], blk["g1"], blk["be1"],
      blk["W2"], blk["P2"], blk["Wb2"], blk["bb2"], blk["g2"], blk["be2"],
      blk["wih_f"], blk["whh_f"], blk["b_f"],
      blk["wih_b"], blk["whh_b"], blk["b_b"],
      hd["wr"], hd["br"], hd["wv"], hd["bv"])


# ----------------------------------------------------------------------------
# Deterministic synthetic parameters (shapes follow the module __init__).
# ----------------------------------------------------------------------------
def init_params(key, V, E, H, K, n_blocks):
    hid = H // 2
    N = n_blocks
    keys = iter(jax.random.split(key, 64))

    def u(shape, scale=0.2):
        return jax.random.uniform(next(keys), shape, jnp.float32, -scale, scale)

    embedding = u((V, E)).at[0].set(0.0)                      # padding_idx = 0
    encoder = dict(embedding=embedding, w_tr=u((E, H)), b_tr=u((1, H)))

    blocks = dict(
        # InferentialModule inf1 / inf2, stacked over the N blocks
        W1=u((N, H, K)), P1=u((N, 1, K)), Wb1=u((N, 4 * H, H)), bb1=u((N, 1, H)),
        g1=1.0 + u((N, 1, H), 0.05), be1=u((N, 1, H), 0.05),
        W2=u((N, H, K)), P2=u((N, 1, K)), Wb2=u((N, 4 * H, H)), bb2=u((N, 1, H)),
        g2=1.0 + u((N, 1, H), 0.05), be2=u((N, 1, H), 0.05),
        # biLSTM (lstm_layer1; lstm_layer2 unused as in the torch forward).
        # Gate-column layout [i|f|o|g]; bias is the pre-summed b_ih + b_hh.
        wih_f=u((N, 2 * H, 4 * hid)), whh_f=u((N, hid, 4 * hid)), b_f=u((N, 1, 4 * hid)),
        wih_b=u((N, 2 * H, 4 * hid)), whh_b=u((N, hid, 4 * hid)), b_b=u((N, 1, 4 * hid)),
    )
    head = dict(wr=u((8 * H, H)), br=u((1, H)), wv=u((H, 3)), bv=u((1, 3)))
    return dict(encoder=encoder, blocks=blocks, head=head)


if __name__ == "__main__":
    B, S = 2, 8
    V, E, H, K, N = 50, 16, 32, 8, 1     # conf: vocab, emb_dim, hidden, k, N blocks

    key = jax.random.PRNGKey(0)
    kp, k0, k1 = jax.random.split(key, 3)
    params = init_params(kp, V, E, H, K, N)

    x0 = jax.random.randint(k0, (B, S), 1, V).astype(jnp.int32)
    x1 = jax.random.randint(k1, (B, S), 1, V).astype(jnp.int32)

    y = jax.jit(adin_forward)(x0, x1, params)
    y = jax.block_until_ready(y)
    assert y.shape == (B, 3) and y.dtype == jnp.float32
    print("KERNEL_OK")
</pallas_src>

<mosaic_0001>
module attributes {stable_mosaic.version = 11 : i64} {
  func.func @_adin_kernel(%arg0: memref<32x16xf32, #tpu.memory_space<vmem>>, %arg1: memref<16x32xf32, #tpu.memory_space<vmem>>, %arg2: memref<1x32xf32, #tpu.memory_space<vmem>>, %arg3: memref<1x32x8xf32, #tpu.memory_space<vmem>>, %arg4: memref<1x1x8xf32, #tpu.memory_space<vmem>>, %arg5: memref<1x128x32xf32, #tpu.memory_space<vmem>>, %arg6: memref<1x1x32xf32, #tpu.memory_space<vmem>>, %arg7: memref<1x1x32xf32, #tpu.memory_space<vmem>>, %arg8: memref<1x1x32xf32, #tpu.memory_space<vmem>>, %arg9: memref<1x32x8xf32, #tpu.memory_space<vmem>>, %arg10: memref<1x1x8xf32, #tpu.memory_space<vmem>>, %arg11: memref<1x128x32xf32, #tpu.memory_space<vmem>>, %arg12: memref<1x1x32xf32, #tpu.memory_space<vmem>>, %arg13: memref<1x1x32xf32, #tpu.memory_space<vmem>>, %arg14: memref<1x1x32xf32, #tpu.memory_space<vmem>>, %arg15: memref<1x64x64xf32, #tpu.memory_space<vmem>>, %arg16: memref<1x16x64xf32, #tpu.memory_space<vmem>>, %arg17: memref<1x1x64xf32, #tpu.memory_space<vmem>>, %arg18: memref<1x64x64xf32, #tpu.memory_space<vmem>>, %arg19: memref<1x16x64xf32, #tpu.memory_space<vmem>>, %arg20: memref<1x1x64xf32, #tpu.memory_space<vmem>>, %arg21: memref<256x32xf32, #tpu.memory_space<vmem>>, %arg22: memref<1x32xf32, #tpu.memory_space<vmem>>, %arg23: memref<32x3xf32, #tpu.memory_space<vmem>>, %arg24: memref<1x3xf32, #tpu.memory_space<vmem>>, %arg25: memref<2x3xf32, #tpu.memory_space<vmem>>, %arg26: memref<16x32xf32, #tpu.memory_space<vmem>>, %arg27: memref<16x32xf32, #tpu.memory_space<vmem>>, %arg28: memref<32x64xf32, #tpu.memory_space<vmem>>, %arg29: memref<32x64xf32, #tpu.memory_space<vmem>>) attributes {dimension_semantics = [], scalar_prefetch = 0 : i64, scratch_operands = 4 : i64, tpu.core_type = #tpu.core_type<tc>} {
    %c0 = arith.constant 0 : index
    %c0_0 = arith.constant 0 : index
    %0 = vector.load %arg0[%c0, %c0_0] : memref<32x16xf32, #tpu.memory_space<vmem>>, vector<32x16xf32>
    %c0_1 = arith.constant 0 : index
    %c0_2 = arith.constant 0 : index
    %1 = vector.load %arg1[%c0_1, %c0_2] : memref<16x32xf32, #tpu.memory_space<vmem>>, vector<16x32xf32>
    %cst = arith.constant dense<0.000000e+00> : vector<32x32xf32>
    %2 = tpu.matmul %0, %1, %cst {dimension_numbers = #tpu.dot_dimension_numbers<[1], [0], [0], [1], [0, 0, 1, 1], [], []>} : vector<32x16xf32>, vector<16x32xf32>, vector<32x32xf32> -> vector<32x32xf32>
    %c0_3 = arith.constant 0 : index
    %c0_4 = arith.constant 0 : index
    %3 = vector.load %arg2[%c0_3, %c0_4] : memref<1x32xf32, #tpu.memory_space<vmem>>, vector<1x32xf32>
    %4 = vector.broadcast %3 : vector<1x32xf32> to vector<32x32xf32>
    %5 = arith.addf %2, %4 : vector<32x32xf32>
    %cst_5 = arith.constant 0.000000e+00 : f32
    %6 = vector.broadcast %cst_5 : f32 to vector<32x32xf32>
    %7 = arith.maximumf %5, %6 : vector<32x32xf32>
    %8 = vector.extract_strided_slice %7 {offsets = [0, 0], sizes = [16, 32], strides = [1, 1]} : vector<32x32xf32> to vector<16x32xf32>
    %9 = vector.extract_strided_slice %7 {offsets = [16, 0], sizes = [16, 32], strides = [1, 1]} : vector<32x32xf32> to vector<16x32xf32>
    %c0_6 = arith.constant 0 : index
    %c0_7 = arith.constant 0 : index
    %c0_8 = arith.constant 0 : index
    %10 = vector.load %arg3[%c0_6, %c0_7, %c0_8] : memref<1x32x8xf32, #tpu.memory_space<vmem>>, vector<1x32x8xf32>
    %11 = vector.shape_cast %10 : vector<1x32x8xf32> to vector<32x8xf32>
    %c0_9 = arith.constant 0 : index
    %c0_10 = arith.constant 0 : index
    %c0_11 = arith.constant 0 : index
    %12 = vector.load %arg4[%c0_9, %c0_10, %c0_11] : memref<1x1x8xf32, #tpu.memory_space<vmem>>, vector<1x1x8xf32>
    %13 = vector.shape_cast %12 : vector<1x1x8xf32> to vector<1x8xf32>
    %c0_12 = arith.constant 0 : index
    %c0_13 = arith.constant 0 : index
    %c0_14 = arith.constant 0 : index
    %14 = vector.load %arg5[%c0_12, %c0_13, %c0_14] : memref<1x128x32xf32, #tpu.memory_space<vmem>>, vector<1x128x32xf32>
    %15 = vector.shape_cast %14 : vector<1x128x32xf32> to vector<128x32xf32>
    %c0_15 = arith.constant 0 : index
    %c0_16 = arith.constant 0 : index
    %c0_17 = arith.constant 0 : index
    %16 = vector.load %arg6[%c0_15, %c0_16, %c0_17] : memref<1x1x32xf32, #tpu.memory_space<vmem>>, vector<1x1x32xf32>
    %17 = vector.shape_cast %16 : vector<1x1x32xf32> to vector<1x32xf32>
    %c0_18 = arith.constant 0 : index
    %c0_19 = arith.constant 0 : index
    %c0_20 = arith.constant 0 : index
    %18 = vector.load %arg7[%c0_18, %c0_19, %c0_20] : memref<1x1x32xf32, #tpu.memory_space<vmem>>, vector<1x1x32xf32>
    %19 = vector.shape_cast %18 : vector<1x1x32xf32> to vector<1x32xf32>
    %c0_21 = arith.constant 0 : index
    %c0_22 = arith.constant 0 : index
    %c0_23 = arith.constant 0 : index
    %20 = vector.load %arg8[%c0_21, %c0_22, %c0_23] : memref<1x1x32xf32, #tpu.memory_space<vmem>>, vector<1x1x32xf32>
    %21 = vector.shape_cast %20 : vector<1x1x32xf32> to vector<1x32xf32>
    %22 = arith.mulf %8, %9 : vector<16x32xf32>
    %cst_24 = arith.constant dense<0.000000e+00> : vector<16x8xf32>
    %23 = tpu.matmul %22, %11, %cst_24 {dimension_numbers = #tpu.dot_dimension_numbers<[1], [0], [0], [1], [0, 0, 1, 1], [], []>} : vector<16x32xf32>, vector<32x8xf32>, vector<16x8xf32> -> vector<16x8xf32>
    %24 = math.tanh %23 : vector<16x8xf32>
    %25 = vector.broadcast %13 : vector<1x8xf32> to vector<16x8xf32>
    %26 = arith.mulf %24, %25 : vector<16x8xf32>
    %cst_25 = arith.constant dense<0.000000e+00> : vector<16xf32>
    %27 = vector.multi_reduction <add>, %26, %cst_25 [1] : vector<16x8xf32> to vector<16xf32>
    %28 = vector.shape_cast %27 : vector<16xf32> to vector<16x1xf32>
    %29 = vector.shape_cast %28 : vector<16x1xf32> to vector<1x16x1xf32>
    %cst_26 = arith.constant dense<0xFF800000> : vector<1xf32>
    %30 = vector.multi_reduction <maximumf>, %29, %cst_26 [1, 2] : vector<1x16x1xf32> to vector<1xf32>
    %31 = vector.shape_cast %30 : vector<1xf32> to vector<1x1x1xf32>
    %32 = vector.extract %31[0, 0, 0] : f32 from vector<1x1x1xf32>
    %33 = vector.broadcast %32 : f32 to vector<16x1xf32>
    %34 = arith.subf %28, %33 : vector<16x1xf32>
    %35 = math.exp %34 : vector<16x1xf32>
    %36 = vector.shape_cast %35 : vector<16x1xf32> to vector<2x8x1xf32>
    %cst_27 = arith.constant dense<0.000000e+00> : vector<8x1xf32>
    %37 = vector.multi_reduction <add>, %36, %cst_27 [0] : vector<2x8x1xf32> to vector<8x1xf32>
    %38 = vector.shape_cast %37 : vector<8x1xf32> to vector<1x8x1xf32>
    %39 = vector.broadcast %38 : vector<1x8x1xf32> to vector<2x8x1xf32>
    %40 = arith.divf %36, %39 : vector<2x8x1xf32>
    %41 = vector.shape_cast %40 : vector<2x8x1xf32> to vector<16x1xf32>
    %42 = vector.broadcast %41 : vector<16x1xf32> to vector<16x32xf32>
    %43 = arith.mulf %8, %42 : vector<16x32xf32>
    %44 = arith.subf %9, %43 : vector<16x32xf32>
    %45 = arith.mulf %9, %43 : vector<16x32xf32>
    %46 = tpu.concatenate %9, %43, %44, %45 in 1 : vector<16x32xf32>, vector<16x32xf32>, vector<16x32xf32>, vector<16x32xf32> -> vector<16x128xf32>
    %cst_28 = arith.constant dense<0.000000e+00> : vector<16x32xf32>
    %47 = tpu.matmul %46, %15, %cst_28 {dimension_numbers = #tpu.dot_dimension_numbers<[1], [0], [0], [1], [0, 0, 1, 1], [], []>} : vector<16x128xf32>, vector<128x32xf32>, vector<16x32xf32> -> vector<16x32xf32>
    %48 = vector.broadcast %17 : vector<1x32xf32> to vector<16x32xf32>
    %49 = arith.addf %47, %48 : vector<16x32xf32>
    %cst_29 = arith.constant 0.000000e+00 : f32
    %50 = vector.broadcast %cst_29 : f32 to vector<16x32xf32>
    %51 = arith.maximumf %49, %50 : vector<16x32xf32>
    %cst_30 = arith.constant dense<0.000000e+00> : vector<16xf32>
    %52 = vector.multi_reduction <add>, %51, %cst_30 [1] : vector<16x32xf32> to vector<16xf32>
    %53 = vector.shape_cast %52 : vector<16xf32> to vector<16x1xf32>
    %cst_31 = arith.constant 3.200000e+01 : f32
    %54 = vector.broadcast %cst_31 : f32 to vector<16x1xf32>
    %55 = arith.divf %53, %54 : vector<16x1xf32>
    %56 = vector.broadcast %55 : vector<16x1xf32> to vector<16x32xf32>
    %57 = arith.subf %51, %56 : vector<16x32xf32>
    %58 = arith.mulf %57, %57 : vector<16x32xf32>
    %cst_32 = arith.constant dense<0.000000e+00> : vector<16xf32>
    %59 = vector.multi_reduction <add>, %58, %cst_32 [1] : vector<16x32xf32> to vector<16xf32>
    %60 = vector.shape_cast %59 : vector<16xf32> to vector<16x1xf32>
    %cst_33 = arith.constant 3.200000e+01 : f32
    %61 = vector.broadcast %cst_33 : f32 to vector<16x1xf32>
    %62 = arith.divf %60, %61 : vector<16x1xf32>
    %63 = vector.broadcast %55 : vector<16x1xf32> to vector<16x32xf32>
    %64 = arith.subf %51, %63 : vector<16x32xf32>
    %cst_34 = arith.constant 9.99999974E-6 : f32
    %65 = vector.broadcast %cst_34 : f32 to vector<16x1xf32>
    %66 = arith.addf %62, %65 : vector<16x1xf32>
    %67 = math.rsqrt %66 : vector<16x1xf32>
    %68 = vector.broadcast %67 : vector<16x1xf32> to vector<16x32xf32>
    %69 = arith.mulf %64, %68 : vector<16x32xf32>
    %70 = vector.broadcast %19 : vector<1x32xf32> to vector<16x32xf32>
    %71 = arith.mulf %69, %70 : vector<16x32xf32>
    %72 = vector.broadcast %21 : vector<1x32xf32> to vector<16x32xf32>
    %73 = arith.addf %71, %72 : vector<16x32xf32>
    %c0_35 = arith.constant 0 : index
    %c0_36 = arith.constant 0 : index
    %c0_37 = arith.constant 0 : index
    %74 = vector.load %arg9[%c0_35, %c0_36, %c0_37] : memref<1x32x8xf32, #tpu.memory_space<vmem>>, vector<1x32x8xf32>
    %75 = vector.shape_cast %74 : vector<1x32x8xf32> to vector<32x8xf32>
    %c0_38 = arith.constant 0 : index
    %c0_39 = arith.constant 0 : index
    %c0_40 = arith.constant 0 : index
    %76 = vector.load %arg10[%c0_38, %c0_39, %c0_40] : memref<1x1x8xf32, #tpu.memory_space<vmem>>, vector<1x1x8xf32>
    %77 = vector.shape_cast %76 : vector<1x1x8xf32> to vector<1x8xf32>
    %c0_41 = arith.constant 0 : index
    %c0_42 = arith.constant 0 : index
    %c0_43 = arith.constant 0 : index
    %78 = vector.load %arg11[%c0_41, %c0_42, %c0_43] : memref<1x128x32xf32, #tpu.memory_space<vmem>>, vector<1x128x32xf32>
    %79 = vector.shape_cast %78 : vector<1x128x32xf32> to vector<128x32xf32>
    %c0_44 = arith.constant 0 : index
    %c0_45 = arith.constant 0 : index
    %c0_46 = arith.constant 0 : index
    %80 = vector.load %arg12[%c0_44, %c0_45, %c0_46] : memref<1x1x32xf32, #tpu.memory_space<vmem>>, vector<1x1x32xf32>
    %81 = vector.shape_cast %80 : vector<1x1x32xf32> to vector<1x32xf32>
    %c0_47 = arith.constant 0 : index
    %c0_48 = arith.constant 0 : index
    %c0_49 = arith.constant 0 : index
    %82 = vector.load %arg13[%c0_47, %c0_48, %c0_49] : memref<1x1x32xf32, #tpu.memory_space<vmem>>, vector<1x1x32xf32>
    %83 = vector.shape_cast %82 : vector<1x1x32xf32> to vector<1x32xf32>
    %c0_50 = arith.constant 0 : index
    %c0_51 = arith.constant 0 : index
    %c0_52 = arith.constant 0 : index
    %84 = vector.load %arg14[%c0_50, %c0_51, %c0_52] : memref<1x1x32xf32, #tpu.memory_space<vmem>>, vector<1x1x32xf32>
    %85 = vector.shape_cast %84 : vector<1x1x32xf32> to vector<1x32xf32>
    %86 = arith.mulf %73, %8 : vector<16x32xf32>
    %cst_53 = arith.constant dense<0.000000e+00> : vector<16x8xf32>
    %87 = tpu.matmul %86, %75, %cst_53 {dimension_numbers = #tpu.dot_dimension_numbers<[1], [0], [0], [1], [0, 0, 1, 1], [], []>} : vector<16x32xf32>, vector<32x8xf32>, vector<16x8xf32> -> vector<16x8xf32>
    %88 = math.tanh %87 : vector<16x8xf32>
    %89 = vector.broadcast %77 : vector<1x8xf32> to vector<16x8xf32>
    %90 = arith.mulf %88, %89 : vector<16x8xf32>
    %cst_54 = arith.constant dense<0.000000e+00> : vector<16xf32>
    %91 = vector.multi_reduction <add>, %90, %cst_54 [1] : vector<16x8xf32> to vector<16xf32>
    %92 = vector.shape_cast %91 : vector<16xf32> to vector<16x1xf32>
    %93 = vector.shape_cast %92 : vector<16x1xf32> to vector<1x16x1xf32>
    %cst_55 = arith.constant dense<0xFF800000> : vector<1xf32>
    %94 = vector.multi_reduction <maximumf>, %93, %cst_55 [1, 2] : vector<1x16x1xf32> to vector<1xf32>
    %95 = vector.shape_cast %94 : vector<1xf32> to vector<1x1x1xf32>
    %96 = vector.extract %95[0, 0, 0] : f32 from vector<1x1x1xf32>
    %97 = vector.broadcast %96 : f32 to vector<16x1xf32>
    %98 = arith.subf %92, %97 : vector<16x1xf32>
    %99 = math.exp %98 : vector<16x1xf32>
    %100 = vector.shape_cast %99 : vector<16x1xf32> to vector<2x8x1xf32>
    %cst_56 = arith.constant dense<0.000000e+00> : vector<8x1xf32>
    %101 = vector.multi_reduction <add>, %100, %cst_56 [0] : vector<2x8x1xf32> to vector<8x1xf32>
    %102 = vector.shape_cast %101 : vector<8x1xf32> to vector<1x8x1xf32>
    %103 = vector.broadcast %102 : vector<1x8x1xf32> to vector<2x8x1xf32>
    %104 = arith.divf %100, %103 : vector<2x8x1xf32>
    %105 = vector.shape_cast %104 : vector<2x8x1xf32> to vector<16x1xf32>
    %106 = vector.broadcast %105 : vector<16x1xf32> to vector<16x32xf32>
    %107 = arith.mulf %73, %106 : vector<16x32xf32>
    %108 = arith.subf %8, %107 : vector<16x32xf32>
    %109 = arith.mulf %8, %107 : vector<16x32xf32>
    %110 = tpu.concatenate %8, %107, %108, %109 in 1 : vector<16x32xf32>, vector<16x32xf32>, vector<16x32xf32>, vector<16x32xf32> -> vector<16x128xf32>
    %cst_57 = arith.constant dense<0.000000e+00> : vector<16x32xf32>
    %111 = tpu.matmul %110, %79, %cst_57 {dimension_numbers = #tpu.dot_dimension_numbers<[1], [0], [0], [1], [0, 0, 1, 1], [], []>} : vector<16x128xf32>, vector<128x32xf32>, vector<16x32xf32> -> vector<16x32xf32>
    %112 = vector.broadcast %81 : vector<1x32xf32> to vector<16x32xf32>
    %113 = arith.addf %111, %112 : vector<16x32xf32>
    %cst_58 = arith.constant 0.000000e+00 : f32
    %114 = vector.broadcast %cst_58 : f32 to vector<16x32xf32>
    %115 = arith.maximumf %113, %114 : vector<16x32xf32>
    %cst_59 = arith.constant dense<0.000000e+00> : vector<16xf32>
    %116 = vector.multi_reduction <add>, %115, %cst_59 [1] : vector<16x32xf32> to vector<16xf32>
    %117 = vector.shape_cast %116 : vector<16xf32> to vector<16x1xf32>
    %cst_60 = arith.constant 3.200000e+01 : f32
    %118 = vector.broadcast %cst_60 : f32 to vector<16x1xf32>
    %119 = arith.divf %117, %118 : vector<16x1xf32>
    %120 = vector.broadcast %119 : vector<16x1xf32> to vector<16x32xf32>
    %121 = arith.subf %115, %120 : vector<16x32xf32>
    %122 = arith.mulf %121, %121 : vector<16x32xf32>
    %cst_61 = arith.constant dense<0.000000e+00> : vector<16xf32>
    %123 = vector.multi_reduction <add>, %122, %cst_61 [1] : vector<16x32xf32> to vector<16xf32>
    %124 = vector.shape_cast %123 : vector<16xf32> to vector<16x1xf32>
    %cst_62 = arith.constant 3.200000e+01 : f32
    %125 = vector.broadcast %cst_62 : f32 to vector<16x1xf32>
    %126 = arith.divf %124, %125 : vector<16x1xf32>
    %127 = vector.broadcast %119 : vector<16x1xf32> to vector<16x32xf32>
    %128 = arith.subf %115, %127 : vector<16x32xf32>
    %cst_63 = arith.constant 9.99999974E-6 : f32
    %129 = vector.broadcast %cst_63 : f32 to vector<16x1xf32>
    %130 = arith.addf %126, %129 : vector<16x1xf32>
    %131 = math.rsqrt %130 : vector<16x1xf32>
    %132 = vector.broadcast %131 : vector<16x1xf32> to vector<16x32xf32>
    %133 = arith.mulf %128, %132 : vector<16x32xf32>
    %134 = vector.broadcast %83 : vector<1x32xf32> to vector<16x32xf32>
    %135 = arith.mulf %133, %134 : vector<16x32xf32>
    %136 = vector.broadcast %85 : vector<1x32xf32> to vector<16x32xf32>
    %137 = arith.addf %135, %136 : vector<16x32xf32>
    %138 = vector.shape_cast %9 : vector<16x32xf32> to vector<2x8x32xf32>
    %139 = vector.shape_cast %8 : vector<16x32xf32> to vector<2x8x32xf32>
    %140 = tpu.concatenate %138, %139 in 1 : vector<2x8x32xf32>, vector<2x8x32xf32> -> vector<2x16x32xf32>
    %141 = vector.shape_cast %140 : vector<2x16x32xf32> to vector<32x32xf32>
    %142 = vector.shape_cast %73 : vector<16x32xf32> to vector<2x8x32xf32>
    %143 = vector.shape_cast %137 : vector<16x32xf32> to vector<2x8x32xf32>
    %144 = tpu.concatenate %142, %143 in 1 : vector<2x8x32xf32>, vector<2x8x32xf32> -> vector<2x16x32xf32>
    %145 = vector.shape_cast %144 : vector<2x16x32xf32> to vector<32x32xf32>
    %c0_64 = arith.constant 0 : index
    %c0_65 = arith.constant 0 : index
    %c0_66 = arith.constant 0 : index
    %146 = vector.load %arg15[%c0_64, %c0_65, %c0_66] : memref<1x64x64xf32, #tpu.memory_space<vmem>>, vector<1x64x64xf32>
    %147 = vector.shape_cast %146 : vector<1x64x64xf32> to vector<64x64xf32>
    %c0_67 = arith.constant 0 : index
    %c0_68 = arith.constant 0 : index
    %c0_69 = arith.constant 0 : index
    %148 = vector.load %arg18[%c0_67, %c0_68, %c0_69] : memref<1x64x64xf32, #tpu.memory_space<vmem>>, vector<1x64x64xf32>
    %149 = vector.shape_cast %148 : vector<1x64x64xf32> to vector<64x64xf32>
    %150 = vector.extract_strided_slice %147 {offsets = [0, 0], sizes = [32, 64], strides = [1, 1]} : vector<64x64xf32> to vector<32x64xf32>
    %cst_70 = arith.constant dense<0.000000e+00> : vector<32x64xf32>
    %151 = tpu.matmul %141, %150, %cst_70 {dimension_numbers = #tpu.dot_dimension_numbers<[1], [0], [0], [1], [0, 0, 1, 1], [], []>} : vector<32x32xf32>, vector<32x64xf32>, vector<32x64xf32> -> vector<32x64xf32>
    %152 = vector.extract_strided_slice %147 {offsets = [32, 0], sizes = [32, 64], strides = [1, 1]} : vector<64x64xf32> to vector<32x64xf32>
    %cst_71 = arith.constant dense<0.000000e+00> : vector<32x64xf32>
    %153 = tpu.matmul %145, %152, %cst_71 {dimension_numbers = #tpu.dot_dimension_numbers<[1], [0], [0], [1], [0, 0, 1, 1], [], []>} : vector<32x32xf32>, vector<32x64xf32>, vector<32x64xf32> -> vector<32x64xf32>
    %154 = arith.addf %151, %153 : vector<32x64xf32>
    %c0_72 = arith.constant 0 : index
    %c0_73 = arith.constant 0 : index
    %c0_74 = arith.constant 0 : index
    %155 = vector.load %arg17[%c0_72, %c0_73, %c0_74] : memref<1x1x64xf32, #tpu.memory_space<vmem>>, vector<1x1x64xf32>
    %156 = vector.shape_cast %155 : vector<1x1x64xf32> to vector<1x64xf32>
    %157 = vector.broadcast %156 : vector<1x64xf32> to vector<32x64xf32>
    %158 = arith.addf %154, %157 : vector<32x64xf32>
    %c0_75 = arith.constant 0 : index
    %c0_76 = arith.constant 0 : index
    %159 = vector.load %arg28[%c0_75, %c0_76] : memref<32x64xf32, #tpu.memory_space<vmem>>, vector<32x64xf32>
    tpu.vector_store %arg28[%c0_75, %c0_76], %158 {strides = array<i32>} : memref<32x64xf32, #tpu.memory_space<vmem>>, vector<32x64xf32>,
    %160 = vector.extract_strided_slice %149 {offsets = [0, 0], sizes = [32, 64], strides = [1, 1]} : vector<64x64xf32> to vector<32x64xf32>
    %cst_77 = arith.constant dense<0.000000e+00> : vector<32x64xf32>
    %161 = tpu.matmul %141, %160, %cst_77 {dimension_numbers = #tpu.dot_dimension_numbers<[1], [0], [0], [1], [0, 0, 1, 1], [], []>} : vector<32x32xf32>, vector<32x64xf32>, vector<32x64xf32> -> vector<32x64xf32>
    %162 = vector.extract_strided_slice %149 {offsets = [32, 0], sizes = [32, 64], strides = [1, 1]} : vector<64x64xf32> to vector<32x64xf32>
    %cst_78 = arith.constant dense<0.000000e+00> : vector<32x64xf32>
    %163 = tpu.matmul %145, %162, %cst_78 {dimension_numbers = #tpu.dot_dimension_numbers<[1], [0], [0], [1], [0, 0, 1, 1], [], []>} : vector<32x32xf32>, vector<32x64xf32>, vector<32x64xf32> -> vector<32x64xf32>
    %164 = arith.addf %161, %163 : vector<32x64xf32>
    %c0_79 = arith.constant 0 : index
    %c0_80 = arith.constant 0 : index
    %c0_81 = arith.constant 0 : index
    %165 = vector.load %arg20[%c0_79, %c0_80, %c0_81] : memref<1x1x64xf32, #tpu.memory_space<vmem>>, vector<1x1x64xf32>
    %166 = vector.shape_cast %165 : vector<1x1x64xf32> to vector<1x64xf32>
    %167 = vector.broadcast %166 : vector<1x64xf32> to vector<32x64xf32>
    %168 = arith.addf %164, %167 : vector<32x64xf32>
    %c0_82 = arith.constant 0 : index
    %c0_83 = arith.constant 0 : index
    %169 = vector.load %arg29[%c0_82, %c0_83] : memref<32x64xf32, #tpu.memory_space<vmem>>, vector<32x64xf32>
    tpu.vector_store %arg29[%c0_82, %c0_83], %168 {strides = array<i32>} : memref<32x64xf32, #tpu.memory_space<vmem>>, vector<32x64xf32>,
    %c0_84 = arith.constant 0 : index
    %c0_85 = arith.constant 0 : index
    %c0_86 = arith.constant 0 : index
    %170 = vector.load %arg16[%c0_84, %c0_85, %c0_86] : memref<1x16x64xf32, #tpu.memory_space<vmem>>, vector<1x16x64xf32>
    %171 = vector.shape_cast %170 : vector<1x16x64xf32> to vector<16x64xf32>
    %c0_87 = arith.constant 0 : index
    %c0_88 = arith.constant 0 : index
    %c0_89 = arith.constant 0 : index
    %172 = vector.load %arg19[%c0_87, %c0_88, %c0_89] : memref<1x16x64xf32, #tpu.memory_space<vmem>>, vector<1x16x64xf32>
    %173 = vector.shape_cast %172 : vector<1x16x64xf32> to vector<16x64xf32>
    %cst_90 = arith.constant 0.000000e+00 : f32
    %174 = vector.broadcast %cst_90 : f32 to vector<16x16xf32>
    %c0_i32 = arith.constant 0 : i32
    %c1_i32 = arith.constant 1 : i32
    %175 = arith.subi %c1_i32, %c0_i32 : i32
    %c16_i32 = arith.constant 16 : i32
    %176 = arith.muli %c0_i32, %c16_i32 : i32
    %177 = tpu.assume_multiple %176, 16 : i32
    %c16_i32_91 = arith.constant 16 : i32
    %178 = arith.muli %175, %c16_i32_91 : i32
    %179 = tpu.assume_multiple %178, 16 : i32
    %180 = arith.index_cast %177 : i32 to index
    %c0_92 = arith.constant 0 : index
    %181 = vector.load %arg28[%180, %c0_92] : memref<32x64xf32, #tpu.memory_space<vmem>>, vector<16x64xf32>
    %cst_93 = arith.constant dense<0.000000e+00> : vector<16x64xf32>
    %182 = tpu.matmul %174, %171, %cst_93 {dimension_numbers = #tpu.dot_dimension_numbers<[1], [0], [0], [1], [0, 0, 1, 1], [], []>} : vector<16x16xf32>, vector<16x64xf32>, vector<16x64xf32> -> vector<16x64xf32>
    %183 = arith.addf %181, %182 : vector<16x64xf32>
    %184 = vector.extract_strided_slice %183 {offsets = [0, 0], sizes = [16, 48], strides = [1, 1]} : vector<16x64xf32> to vector<16x48xf32>
    %185 = arith.negf %184 : vector<16x48xf32>
    %186 = math.exp %185 : vector<16x48xf32>
    %cst_94 = arith.constant 1.000000e+00 : f32
    %187 = vector.broadcast %cst_94 : f32 to vector<16x48xf32>
    %188 = arith.addf %187, %186 : vector<16x48xf32>
    %189 = arith.divf %187, %188 : vector<16x48xf32>
    %190 = vector.extract_strided_slice %183 {offsets = [0, 48], sizes = [16, 16], strides = [1, 1]} : vector<16x64xf32> to vector<16x16xf32>
    %191 = math.tanh %190 : vector<16x16xf32>
    %192 = vector.extract_strided_slice %189 {offsets = [0, 0], sizes = [16, 16], strides = [1, 1]} : vector<16x48xf32> to vector<16x16xf32>
    %193 = vector.extract_strided_slice %189 {offsets = [0, 16], sizes = [16, 16], strides = [1, 1]} : vector<16x48xf32> to vector<16x16xf32>
    %194 = vector.extract_strided_slice %189 {offsets = [0, 32], sizes = [16, 16], strides = [1, 1]} : vector<16x48xf32> to vector<16x16xf32>
    %195 = arith.mulf %193, %174 : vector<16x16xf32>
    %196 = arith.mulf %192, %191 : vector<16x16xf32>
    %197 = arith.addf %195, %196 : vector<16x16xf32>
    %198 = math.tanh %197 : vector<16x16xf32>
    %199 = arith.mulf %194, %198 : vector<16x16xf32>
    %200 = arith.index_cast %179 : i32 to index
    %c0_95 = arith.constant 0 : index
    %201 = vector.load %arg29[%200, %c0_95] : memref<32x64xf32, #tpu.memory_space<vmem>>, vector<16x64xf32>
    %cst_96 = arith.constant dense<0.000000e+00> : vector<16x64xf32>
    %202 = tpu.matmul %174, %173, %cst_96 {dimension_numbers = #tpu.dot_dimension_numbers<[1], [0], [0], [1], [0, 0, 1, 1], [], []>} : vector<16x16xf32>, vector<16x64xf32>, vector<16x64xf32> -> vector<16x64xf32>
    %203 = arith.addf %201, %202 : vector<16x64xf32>
    %204 = vector.extract_strided_slice %203 {offsets = [0, 0], sizes = [16, 48], strides = [1, 1]} : vector<16x64xf32> to vector<16x48xf32>
    %205 = arith.negf %204 : vector<16x48xf32>
    %206 = math.exp %205 : vector<16x48xf32>
    %cst_97 = arith.constant 1.000000e+00 : f32
    %207 = vector.broadcast %cst_97 : f32 to vector<16x48xf32>
    %208 = arith.addf %207, %206 : vector<16x48xf32>
    %209 = arith.divf %207, %208 : vector<16x48xf32>
    %210 = vector.extract_strided_slice %203 {offsets = [0, 48], sizes = [16, 16], strides = [1, 1]} : vector<16x64xf32> to vector<16x16xf32>
    %211 = math.tanh %210 : vector<16x16xf32>
    %212 = vector.extract_strided_slice %209 {offsets = [0, 0], sizes = [16, 16], strides = [1, 1]} : vector<16x48xf32> to vector<16x16xf32>
    %213 = vector.extract_strided_slice %209 {offsets = [0, 16], sizes = [16, 16], strides = [1, 1]} : vector<16x48xf32> to vector<16x16xf32>
    %214 = vector.extract_strided_slice %209 {offsets = [0, 32], sizes = [16, 16], strides = [1, 1]} : vector<16x48xf32> to vector<16x16xf32>
    %215 = arith.mulf %213, %174 : vector<16x16xf32>
    %216 = arith.mulf %212, %211 : vector<16x16xf32>
    %217 = arith.addf %215, %216 : vector<16x16xf32>
    %218 = math.tanh %217 : vector<16x16xf32>
    %219 = arith.mulf %214, %218 : vector<16x16xf32>
    %c8_i32 = arith.constant 8 : i32
    %220 = arith.muli %c0_i32, %c8_i32 : i32
    %221 = tpu.assume_multiple %220, 8 : i32
    %c8_i32_98 = arith.constant 8 : i32
    %222 = arith.muli %175, %c8_i32_98 : i32
    %223 = tpu.assume_multiple %222, 8 : i32
    %224 = vector.extract_strided_slice %199 {offsets = [0, 0], sizes = [8, 16], strides = [1, 1]} : vector<16x16xf32> to vector<8x16xf32>
    %225 = arith.index_cast %221 : i32 to index
    %c0_99 = arith.constant 0 : index
    %226 = vector.load %arg27[%225, %c0_99] : memref<16x32xf32, #tpu.memory_space<vmem>>, vector<8x16xf32>
    tpu.vector_store %arg27[%225, %c0_99], %224 {strides = array<i32>} : memref<16x32xf32, #tpu.memory_space<vmem>>, vector<8x16xf32>,
    %227 = vector.extract_strided_slice %199 {offsets = [8, 0], sizes = [8, 16], strides = [1, 1]} : vector<16x16xf32> to vector<8x16xf32>
    %228 = arith.index_cast %221 : i32 to index
    %c0_100 = arith.constant 0 : index
    %229 = vector.load %arg26[%228, %c0_100] : memref<16x32xf32, #tpu.memory_space<vmem>>, vector<8x16xf32>
    tpu.vector_store %arg26[%228, %c0_100], %227 {strides = array<i32>} : memref<16x32xf32, #tpu.memory_space<vmem>>, vector<8x16xf32>,
    %230 = vector.extract_strided_slice %219 {offsets = [0, 0], sizes = [8, 16], strides = [1, 1]} : vector<16x16xf32> to vector<8x16xf32>
    %231 = arith.index_cast %223 : i32 to index
    %c16 = arith.constant 16 : index
    %232 = vector.load %arg27[%231, %c16] : memref<16x32xf32, #tpu.memory_space<vmem>>, vector<8x16xf32>
    tpu.vector_store %arg27[%231, %c16], %230 {strides = array<i32>} : memref<16x32xf32, #tpu.memory_space<vmem>>, vector<8x16xf32>,
    %233 = vector.extract_strided_slice %219 {offsets = [8, 0], sizes = [8, 16], strides = [1, 1]} : vector<16x16xf32> to vector<8x16xf32>
    %234 = arith.index_cast %223 : i32 to index
    %c16_101 = arith.constant 16 : index
    %235 = vector.load %arg26[%234, %c16_101] : memref<16x32xf32, #tpu.memory_space<vmem>>, vector<8x16xf32>
    tpu.vector_store %arg26[%234, %c16_101], %233 {strides = array<i32>} : memref<16x32xf32, #tpu.memory_space<vmem>>, vector<8x16xf32>,
    %c1_i32_102 = arith.constant 1 : i32
    %c1_i32_103 = arith.constant 1 : i32
    %236 = arith.subi %c1_i32_103, %c1_i32_102 : i32
    %c16_i32_104 = arith.constant 16 : i32
    %237 = arith.muli %c1_i32_102, %c16_i32_104 : i32
    %238 = tpu.assume_multiple %237, 16 : i32
    %c16_i32_105 = arith.constant 16 : i32
    %239 = arith.muli %236, %c16_i32_105 : i32
    %240 = tpu.assume_multiple %239, 16 : i32
    %241 = arith.index_cast %238 : i32 to index
    %c0_106 = arith.constant 0 : index
    %242 = vector.load %arg28[%241, %c0_106] : memref<32x64xf32, #tpu.memory_space<vmem>>, vector<16x64xf32>
    %cst_107 = arith.constant dense<0.000000e+00> : vector<16x64xf32>
    %243 = tpu.matmul %199, %171, %cst_107 {dimension_numbers = #tpu.dot_dimension_numbers<[1], [0], [0], [1], [0, 0, 1, 1], [], []>} : vector<16x16xf32>, vector<16x64xf32>, vector<16x64xf32> -> vector<16x64xf32>
    %244 = arith.addf %242, %243 : vector<16x64xf32>
    %245 = vector.extract_strided_slice %244 {offsets = [0, 0], sizes = [16, 48], strides = [1, 1]} : vector<16x64xf32> to vector<16x48xf32>
    %246 = arith.negf %245 : vector<16x48xf32>
    %247 = math.exp %246 : vector<16x48xf32>
    %cst_108 = arith.constant 1.000000e+00 : f32
    %248 = vector.broadcast %cst_108 : f32 to vector<16x48xf32>
    %249 = arith.addf %248, %247 : vector<16x48xf32>
    %250 = arith.divf %248, %249 : vector<16x48xf32>
    %251 = vector.extract_strided_slice %244 {offsets = [0, 48], sizes = [16, 16], strides = [1, 1]} : vector<16x64xf32> to vector<16x16xf32>
    %252 = math.tanh %251 : vector<16x16xf32>
    %253 = vector.extract_strided_slice %250 {offsets = [0, 0], sizes = [16, 16], strides = [1, 1]} : vector<16x48xf32> to vector<16x16xf32>
    %254 = vector.extract_strided_slice %250 {offsets = [0, 16], sizes = [16, 16], strides = [1, 1]} : vector<16x48xf32> to vector<16x16xf32>
    %255 = vector.extract_strided_slice %250 {offsets = [0, 32], sizes = [16, 16], strides = [1, 1]} : vector<16x48xf32> to vector<16x16xf32>
    %256 = arith.mulf %254, %197 : vector<16x16xf32>
    %257 = arith.mulf %253, %252 : vector<16x16xf32>
    %258 = arith.addf %256, %257 : vector<16x16xf32>
    %259 = math.tanh %258 : vector<16x16xf32>
    %260 = arith.mulf %255, %259 : vector<16x16xf32>
    %261 = arith.index_cast %240 : i32 to index
    %c0_109 = arith.constant 0 : index
    %262 = vector.load %arg29[%261, %c0_109] : memref<32x64xf32, #tpu.memory_space<vmem>>, vector<16x64xf32>
    %cst_110 = arith.constant dense<0.000000e+00> : vector<16x64xf32>
    %263 = tpu.matmul %219, %173, %cst_110 {dimension_numbers = #tpu.dot_dimension_numbers<[1], [0], [0], [1], [0, 0, 1, 1], [], []>} : vector<16x16xf32>, vector<16x64xf32>, vector<16x64xf32> -> vector<16x64xf32>
    %264 = arith.addf %262, %263 : vector<16x64xf32>
    %265 = vector.extract_strided_slice %264 {offsets = [0, 0], sizes = [16, 48], strides = [1, 1]} : vector<16x64xf32> to vector<16x48xf32>
    %266 = arith.negf %265 : vector<16x48xf32>
    %267 = math.exp %266 : vector<16x48xf32>
    %cst_111 = arith.constant 1.000000e+00 : f32
    %268 = vector.broadcast %cst_111 : f32 to vector<16x48xf32>
    %269 = arith.addf %268, %267 : vector<16x48xf32>
    %270 = arith.divf %268, %269 : vector<16x48xf32>
    %271 = vector.extract_strided_slice %264 {offsets = [0, 48], sizes = [16, 16], strides = [1, 1]} : vector<16x64xf32> to vector<16x16xf32>
    %272 = math.tanh %271 : vector<16x16xf32>
    %273 = vector.extract_strided_slice %270 {offsets = [0, 0], sizes = [16, 16], strides = [1, 1]} : vector<16x48xf32> to vector<16x16xf32>
    %274 = vector.extract_strided_slice %270 {offsets = [0, 16], sizes = [16, 16], strides = [1, 1]} : vector<16x48xf32> to vector<16x16xf32>
    %275 = vector.extract_strided_slice %270 {offsets = [0, 32], sizes = [16, 16], strides = [1, 1]} : vector<16x48xf32> to vector<16x16xf32>
    %276 = arith.mulf %274, %217 : vector<16x16xf32>
    %277 = arith.mulf %273, %272 : vector<16x16xf32>
    %278 = arith.addf %276, %277 : vector<16x16xf32>
    %279 = math.tanh %278 : vector<16x16xf32>
    %280 = arith.mulf %275, %279 : vector<16x16xf32>
    %c8_i32_112 = arith.constant 8 : i32
    %281 = arith.muli %c1_i32_102, %c8_i32_112 : i32
    %282 = tpu.assume_multiple %281, 8 : i32
    %c8_i32_113 = arith.constant 8 : i32
    %283 = arith.muli %236, %c8_i32_113 : i32
    %284 = tpu.assume_multiple %283, 8 : i32
    %285 = vector.extract_strided_slice %260 {offsets = [0, 0], sizes = [8, 16], strides = [1, 1]} : vector<16x16xf32> to vector<8x16xf32>
    %286 = arith.index_cast %282 : i32 to index
    %c0_114 = arith.constant 0 : index
    %287 = vector.load %arg27[%286, %c0_114] : memref<16x32xf32, #tpu.memory_space<vmem>>, vector<8x16xf32>
    tpu.vector_store %arg27[%286, %c0_114], %285 {strides = array<i32>} : memref<16x32xf32, #tpu.memory_space<vmem>>, vector<8x16xf32>,
    %288 = vector.extract_strided_slice %260 {offsets = [8, 0], sizes = [8, 16], strides = [1, 1]} : vector<16x16xf32> to vector<8x16xf32>
    %289 = arith.index_cast %282 : i32 to index
    %c0_115 = arith.constant 0 : index
    %290 = vector.load %arg26[%289, %c0_115] : memref<16x32xf32, #tpu.memory_space<vmem>>, vector<8x16xf32>
    tpu.vector_store %arg26[%289, %c0_115], %288 {strides = array<i32>} : memref<16x32xf32, #tpu.memory_space<vmem>>, vector<8x16xf32>,
    %291 = vector.extract_strided_slice %280 {offsets = [0, 0], sizes = [8, 16], strides = [1, 1]} : vector<16x16xf32> to vector<8x16xf32>
    %292 = arith.index_cast %284 : i32 to index
    %c16_116 = arith.constant 16 : index
    %293 = vector.load %arg27[%292, %c16_116] : memref<16x32xf32, #tpu.memory_space<vmem>>, vector<8x16xf32>
    tpu.vector_store %arg27[%292, %c16_116], %291 {strides = array<i32>} : memref<16x32xf32, #tpu.memory_space<vmem>>, vector<8x16xf32>,
    %294 = vector.extract_strided_slice %280 {offsets = [8, 0], sizes = [8, 16], strides = [1, 1]} : vector<16x16xf32> to vector<8x16xf32>
    %295 = arith.index_cast %284 : i32 to index
    %c16_117 = arith.constant 16 : index
    %296 = vector.load %arg26[%295, %c16_117] : memref<16x32xf32, #tpu.memory_space<vmem>>, vector<8x16xf32>
    tpu.vector_store %arg26[%295, %c16_117], %294 {strides = array<i32>} : memref<16x32xf32, #tpu.memory_space<vmem>>, vector<8x16xf32>,
    %c2_i32 = arith.constant 2 : i32
    %c0_118 = arith.constant 0 : index
    %c0_119 = arith.constant 0 : index
    %297 = vector.load %arg26[%c0_118, %c0_119] : memref<16x32xf32, #tpu.memory_space<vmem>>, vector<16x32xf32>
    %c0_120 = arith.constant 0 : index
    %c0_121 = arith.constant 0 : index
    %298 = vector.load %arg27[%c0_120, %c0_121] : memref<16x32xf32, #tpu.memory_space<vmem>>, vector<16x32xf32>
    %299 = vector.shape_cast %297 : vector<16x32xf32> to vector<2x8x32xf32>
    %300 = vector.shape_cast %298 : vector<16x32xf32> to vector<2x8x32xf32>
    %cst_122 = arith.constant dense<0.000000e+00> : vector<2x32xf32>
    %301 = vector.multi_reduction <add>, %299, %cst_122 [1] : vector<2x8x32xf32> to vector<2x32xf32>
    %cst_123 = arith.constant 8.000000e+00 : f32
    %302 = vector.broadcast %cst_123 : f32 to vector<2x32xf32>
    %303 = arith.divf %301, %302 : vector<2x32xf32>
    %cst_124 = arith.constant dense<0xFF800000> : vector<2x32xf32>
    %304 = vector.multi_reduction <maximumf>, %299, %cst_124 [1] : vector<2x8x32xf32> to vector<2x32xf32>
    %305 = tpu.concatenate %303, %304 in 1 : vector<2x32xf32>, vector<2x32xf32> -> vector<2x64xf32>
    %cst_125 = arith.constant dense<0.000000e+00> : vector<2x32xf32>
    %306 = vector.multi_reduction <add>, %300, %cst_125 [1] : vector<2x8x32xf32> to vector<2x32xf32>
    %cst_126 = arith.constant 8.000000e+00 : f32
    %307 = vector.broadcast %cst_126 : f32 to vector<2x32xf32>
    %308 = arith.divf %306, %307 : vector<2x32xf32>
    %cst_127 = arith.constant dense<0xFF800000> : vector<2x32xf32>
    %309 = vector.multi_reduction <maximumf>, %300, %cst_127 [1] : vector<2x8x32xf32> to vector<2x32xf32>
    %310 = tpu.concatenate %308, %309 in 1 : vector<2x32xf32>, vector<2x32xf32> -> vector<2x64xf32>
    %311 = arith.subf %305, %310 : vector<2x64xf32>
    %312 = arith.mulf %305, %310 : vector<2x64xf32>
    %313 = tpu.concatenate %305, %310, %311, %312 in 1 : vector<2x64xf32>, vector<2x64xf32>, vector<2x64xf32>, vector<2x64xf32> -> vector<2x256xf32>
    %c0_128 = arith.constant 0 : index
    %c0_129 = arith.constant 0 : index
    %314 = vector.load %arg21[%c0_128, %c0_129] : memref<256x32xf32, #tpu.memory_space<vmem>>, vector<256x32xf32>
    %cst_130 = arith.constant dense<0.000000e+00> : vector<2x32xf32>
    %315 = tpu.matmul %313, %314, %cst_130 {dimension_numbers = #tpu.dot_dimension_numbers<[1], [0], [0], [1], [0, 0, 1, 1], [], []>} : vector<2x256xf32>, vector<256x32xf32>, vector<2x32xf32> -> vector<2x32xf32>
    %c0_131 = arith.constant 0 : index
    %c0_132 = arith.constant 0 : index
    %316 = vector.load %arg22[%c0_131, %c0_132] : memref<1x32xf32, #tpu.memory_space<vmem>>, vector<1x32xf32>
    %317 = vector.broadcast %316 : vector<1x32xf32> to vector<2x32xf32>
    %318 = arith.addf %315, %317 : vector<2x32xf32>
    %cst_133 = arith.constant 0.000000e+00 : f32
    %319 = vector.broadcast %cst_133 : f32 to vector<2x32xf32>
    %320 = arith.maximumf %318, %319 : vector<2x32xf32>
    %c0_134 = arith.constant 0 : index
    %c0_135 = arith.constant 0 : index
    %321 = vector.load %arg23[%c0_134, %c0_135] : memref<32x3xf32, #tpu.memory_space<vmem>>, vector<32x3xf32>
    %cst_136 = arith.constant dense<0.000000e+00> : vector<2x3xf32>
    %322 = tpu.matmul %320, %321, %cst_136 {dimension_numbers = #tpu.dot_dimension_numbers<[1], [0], [0], [1], [0, 0, 1, 1], [], []>} : vector<2x32xf32>, vector<32x3xf32>, vector<2x3xf32> -> vector<2x3xf32>
    %c0_137 = arith.constant 0 : index
    %c0_138 = arith.constant 0 : index
    %323 = vector.load %arg24[%c0_137, %c0_138] : memref<1x3xf32, #tpu.memory_space<vmem>>, vector<1x3xf32>
    %324 = vector.broadcast %323 : vector<1x3xf32> to vector<2x3xf32>
    %325 = arith.addf %322, %324 : vector<2x3xf32>
    %c0_139 = arith.constant 0 : index
    %c0_140 = arith.constant 0 : index
    %326 = vector.load %arg25[%c0_139, %c0_140] : memref<2x3xf32, #tpu.memory_space<vmem>>, vector<2x3xf32>
    tpu.vector_store %arg25[%c0_139, %c0_140], %325 {strides = array<i32>} : memref<2x3xf32, #tpu.memory_space<vmem>>, vector<2x3xf32>,
    return
  }
}

</mosaic_0001>

<llo_original>
// kernel: adin_forward.1
$region0: #{adin_forward.1}
  #allocation0 [shape = 'u32[]', space=smem, size = 0x4, offset = 0x4, fixed_abs, tag = 'smem constant byte address 0x4 - core index']
  #allocation1 [shape = 'u32[144,128]{1,0:T(1,128)}', space=vmem, size = 0x12000, scoped, tag = 'internal scratch']
  #allocation2 [shape = 'f32[16,32]{1,0:T(8,128)}', space=vmem, size = 0x2000, scoped, tag = 'scratch operand']
  #allocation3 [shape = 'f32[16,32]{1,0:T(8,128)}', space=vmem, size = 0x2000, scoped, tag = 'scratch operand']
  #allocation4 [shape = 'f32[32,64]{1,0:T(8,128)}', space=vmem, size = 0x4000, scoped, tag = 'scratch operand']
  #allocation5 [shape = 'f32[32,64]{1,0:T(8,128)}', space=vmem, size = 0x4000, scoped, tag = 'scratch operand']
  %s0 = inlined_call_operand.vmem [shape: f32[32,16], index: 0, kind: input, shape index: {}]
  %s1 = inlined_call_operand.vmem [shape: f32[16,32], index: 1, kind: input, shape index: {}]
  %s2 = inlined_call_operand.vmem [shape: f32[1,32], index: 2, kind: input, shape index: {}]
  %s3 = inlined_call_operand.vmem [shape: f32[1,32,8], index: 3, kind: input, shape index: {}]
  %s4 = inlined_call_operand.vmem [shape: f32[1,1,8], index: 4, kind: input, shape index: {}]
  %s5 = inlined_call_operand.vmem [shape: f32[1,128,32], index: 5, kind: input, shape index: {}]
  %s6 = inlined_call_operand.vmem [shape: f32[1,1,32], index: 6, kind: input, shape index: {}]
  %s7 = inlined_call_operand.vmem [shape: f32[1,1,32], index: 7, kind: input, shape index: {}]
  %s8 = inlined_call_operand.vmem [shape: f32[1,1,32], index: 8, kind: input, shape index: {}]
  %s9 = inlined_call_operand.vmem [shape: f32[1,32,8], index: 9, kind: input, shape index: {}]
  %s10 = inlined_call_operand.vmem [shape: f32[1,1,8], index: 10, kind: input, shape index: {}]
  %s11 = inlined_call_operand.vmem [shape: f32[1,128,32], index: 11, kind: input, shape index: {}]
  %s12 = inlined_call_operand.vmem [shape: f32[1,1,32], index: 12, kind: input, shape index: {}]
  %s13 = inlined_call_operand.vmem [shape: f32[1,1,32], index: 13, kind: input, shape index: {}]
  %s14 = inlined_call_operand.vmem [shape: f32[1,1,32], index: 14, kind: input, shape index: {}]
  %s15 = inlined_call_operand.vmem [shape: f32[1,64,64], index: 15, kind: input, shape index: {}]
  %s16 = inlined_call_operand.vmem [shape: f32[1,16,64], index: 16, kind: input, shape index: {}]
  %s17 = inlined_call_operand.vmem [shape: f32[1,1,64], index: 17, kind: input, shape index: {}]
  %s18 = inlined_call_operand.vmem [shape: f32[1,64,64], index: 18, kind: input, shape index: {}]
  %s19 = inlined_call_operand.vmem [shape: f32[1,16,64], index: 19, kind: input, shape index: {}]
  %s20 = inlined_call_operand.vmem [shape: f32[1,1,64], index: 20, kind: input, shape index: {}]
  %s21 = inlined_call_operand.vmem [shape: f32[256,32], index: 21, kind: input, shape index: {}]
  %s22 = inlined_call_operand.vmem [shape: f32[1,32], index: 22, kind: input, shape index: {}]
  %s23 = inlined_call_operand.vmem [shape: f32[32,3], index: 23, kind: input, shape index: {}]
  %s24 = inlined_call_operand.vmem [shape: f32[1,3], index: 24, kind: input, shape index: {}]
  %s25 = inlined_call_operand.hbm [shape: f32[2,3], index: 25, kind: output, shape index: {}]
  %s26 = sld [smem:[#allocation0]]
  $region110: #{adin_forward.1} parent=0
    _
  %s28 = ssub.s32 1, %s26
  %s29 = scalar_select 0, %s28, %s26
  $region1: #{adin_forward.1} parent=0
    #allocation6 [shape = 'u8[1024]{0}', space=vmem, size = 0x400, scoped, tag = 'output window, operand 0, single buffered']
    #allocation7 [shape = 's32[1]{0}', space=sflag, size = 0x4, scoped, tag = 'scoped memory for adin_forward.1']
    %30 = vsyncpa [#allocation7], 0
    // Predicated region
    $region2: #{adin_forward.1} parent=1 // pred_check
      _
    $region3: #{adin_forward.1} parent=1 // pred_check_branch
      %32 = sbr.rel (0) target = $region5
    $region4: #{adin_forward.1} parent=1 // pred_region
      _
    $region5: #{adin_forward.1} parent=1 // pred_fallthru
      _
    // Predicated region
    $region6: #{adin_forward.1} parent=1 // pred_check
      _
    $region7: #{adin_forward.1} parent=1 // pred_check_branch
      %34 = sbr.rel (0) target = $region9
    $region8: #{adin_forward.1} parent=1 // pred_region
      _
    $region9: #{adin_forward.1} parent=1 // pred_fallthru
      _
    // Predicated region
    $region10: #{adin_forward.1} parent=1 // pred_check
      _
    $region11: #{adin_forward.1} parent=1 // pred_check_branch
      %36 = sbr.rel (0) target = $region13
    $region12: #{adin_forward.1} parent=1 // pred_region
      _
    $region13: #{adin_forward.1} parent=1 // pred_fallthru
      _
    // Predicated region
    $region14: #{adin_forward.1} parent=1 // pred_check
      _
    $region15: #{adin_forward.1} parent=1 // pred_check_branch
      %38 = sbr.rel (0) target = $region17
    $region16: #{adin_forward.1} parent=1 // pred_region
      _
    $region17: #{adin_forward.1} parent=1 // pred_fallthru
      _
    // Predicated region
    $region18: #{adin_forward.1} parent=1 // pred_check
      _
    $region19: #{adin_forward.1} parent=1 // pred_check_branch
      %40 = sbr.rel (0) target = $region21
    $region20: #{adin_forward.1} parent=1 // pred_region
      _
    $region21: #{adin_forward.1} parent=1 // pred_fallthru
      _
    // Predicated region
    $region22: #{adin_forward.1} parent=1 // pred_check
      _
    $region23: #{adin_forward.1} parent=1 // pred_check_branch
      %42 = sbr.rel (0) target = $region25
    $region24: #{adin_forward.1} parent=1 // pred_region
      _
    $region25: #{adin_forward.1} parent=1 // pred_fallthru
      _
    // Predicated region
    $region26: #{adin_forward.1} parent=1 // pred_check
      _
    $region27: #{adin_forward.1} parent=1 // pred_check_branch
      %44 = sbr.rel (0) target = $region29
    $region28: #{adin_forward.1} parent=1 // pred_region
      _
    $region29: #{adin_forward.1} parent=1 // pred_fallthru
      _
    // Predicated region
    $region30: #{adin_forward.1} parent=1 // pred_check
      _
    $region31: #{adin_forward.1} parent=1 // pred_check_branch
      %46 = sbr.rel (0) target = $region33
    $region32: #{adin_forward.1} parent=1 // pred_region
      _
    $region33: #{adin_forward.1} parent=1 // pred_fallthru
      _
    // Predicated region
    $region34: #{adin_forward.1} parent=1 // pred_check
      _
    $region35: #{adin_forward.1} parent=1 // pred_check_branch
      %48 = sbr.rel (0) target = $region37
    $region36: #{adin_forward.1} parent=1 // pred_region
      _
    $region37: #{adin_forward.1} parent=1 // pred_fallthru
      _
    // Predicated region
    $region38: #{adin_forward.1} parent=1 // pred_check
      _
    $region39: #{adin_forward.1} parent=1 // pred_check_branch
      %50 = sbr.rel (0) target = $region41
    $region40: #{adin_forward.1} parent=1 // pred_region
      _
    $region41: #{adin_forward.1} parent=1 // pred_fallthru
      _
    // Predicated region
    $region42: #{adin_forward.1} parent=1 // pred_check
      _
    $region43: #{adin_forward.1} parent=1 // pred_check_branch
      %52 = sbr.rel (0) target = $region45
    $region44: #{adin_forward.1} parent=1 // pred_region
      _
    $region45: #{adin_forward.1} parent=1 // pred_fallthru
      _
    // Predicated region
    $region46: #{adin_forward.1} parent=1 // pred_check
      _
    $region47: #{adin_forward.1} parent=1 // pred_check_branch
      %54 = sbr.rel (0) target = $region49
    $region48: #{adin_forward.1} parent=1 // pred_region
      _
    $region49: #{adin_forward.1} parent=1 // pred_fallthru
      _
    // Predicated region
    $region50: #{adin_forward.1} parent=1 // pred_check
      _
    $region51: #{adin_forward.1} parent=1 // pred_check_branch
      %56 = sbr.rel (0) target = $region53
    $region52: #{adin_forward.1} parent=1 // pred_region
      _
    $region53: #{adin_forward.1} parent=1 // pred_fallthru
      _
    // Predicated region
    $region54: #{adin_forward.1} parent=1 // pred_check
      _
    $region55: #{adin_forward.1} parent=1 // pred_check_branch
      %58 = sbr.rel (0) target = $region57
    $region56: #{adin_forward.1} parent=1 // pred_region
      _
    $region57: #{adin_forward.1} parent=1 // pred_fallthru
      _
    // Predicated region
    $region58: #{adin_forward.1} parent=1 // pred_check
      _
    $region59: #{adin_forward.1} parent=1 // pred_check_branch
      %60 = sbr.rel (0) target = $region61
    $region60: #{adin_forward.1} parent=1 // pred_region
      _
    $region61: #{adin_forward.1} parent=1 // pred_fallthru
      _
    // Predicated region
    $region62: #{adin_forward.1} parent=1 // pred_check
      _
    $region63: #{adin_forward.1} parent=1 // pred_check_branch
      %62 = sbr.rel (0) target = $region65
    $region64: #{adin_forward.1} parent=1 // pred_region
      _
    $region65: #{adin_forward.1} parent=1 // pred_fallthru
      _
    // Predicated region
    $region66: #{adin_forward.1} parent=1 // pred_check
      _
    $region67: #{adin_forward.1} parent=1 // pred_check_branch
      %64 = sbr.rel (0) target = $region69
    $region68: #{adin_forward.1} parent=1 // pred_region
      _
    $region69: #{adin_forward.1} parent=1 // pred_fallthru
      _
    // Predicated region
    $region70: #{adin_forward.1} parent=1 // pred_check
      _
    $region71: #{adin_forward.1} parent=1 // pred_check_branch
      %66 = sbr.rel (0) target = $region73
    $region72: #{adin_forward.1} parent=1 // pred_region
      _
    $region73: #{adin_forward.1} parent=1 // pred_fallthru
      _
    // Predicated region
    $region74: #{adin_forward.1} parent=1 // pred_check
      _
    $region75: #{adin_forward.1} parent=1 // pred_check_branch
      %68 = sbr.rel (0) target = $region77
    $region76: #{adin_forward.1} parent=1 // pred_region
      _
    $region77: #{adin_forward.1} parent=1 // pred_fallthru
      _
    // Predicated region
    $region78: #{adin_forward.1} parent=1 // pred_check
      _
    $region79: #{adin_forward.1} parent=1 // pred_check_branch
      %70 = sbr.rel (0) target = $region81
    $region80: #{adin_forward.1} parent=1 // pred_region
      _
    $region81: #{adin_forward.1} parent=1 // pred_fallthru
      _
    // Predicated region
    $region82: #{adin_forward.1} parent=1 // pred_check
      _
    $region83: #{adin_forward.1} parent=1 // pred_check_branch
      %72 = sbr.rel (0) target = $region85
    $region84: #{adin_forward.1} parent=1 // pred_region
      _
    $region85: #{adin_forward.1} parent=1 // pred_fallthru
      _
    // Predicated region
    $region86: #{adin_forward.1} parent=1 // pred_check
      _
    $region87: #{adin_forward.1} parent=1 // pred_check_branch
      %74 = sbr.rel (0) target = $region89
    $region88: #{adin_forward.1} parent=1 // pred_region
      _
    $region89: #{adin_forward.1} parent=1 // pred_fallthru
      _
    // Predicated region
    $region90: #{adin_forward.1} parent=1 // pred_check
      _
    $region91: #{adin_forward.1} parent=1 // pred_check_branch
      %76 = sbr.rel (0) target = $region93
    $region92: #{adin_forward.1} parent=1 // pred_region
      _
    $region93: #{adin_forward.1} parent=1 // pred_fallthru
      _
    // Predicated region
    $region94: #{adin_forward.1} parent=1 // pred_check
      _
    $region95: #{adin_forward.1} parent=1 // pred_check_branch
      %78 = sbr.rel (0) target = $region97
    $region96: #{adin_forward.1} parent=1 // pred_region
      _
    $region97: #{adin_forward.1} parent=1 // pred_fallthru
      _
    // Predicated region
    $region98: #{adin_forward.1} parent=1 // pred_check
      _
    $region99: #{adin_forward.1} parent=1 // pred_check_branch
      %80 = sbr.rel (0) target = $region101
    $region100: #{adin_forward.1} parent=1 // pred_region
      _
    $region101: #{adin_forward.1} parent=1 // pred_fallthru
      _
    %v81 = vld [vmem:[%s0] sm:$0xff]
    %v82 = vld [vmem:[%s0 + $0x8] sm:$0xff]
    %v83 = vld [vmem:[%s0 + $0x10] sm:$0xff]
    %v84 = vld [vmem:[%s0 + $0x18] sm:$0xff]
    %v85 = vld [vmem:[%s1] sm:$0xff]
    %v86 = vld [vmem:[%s1 + $0x8] sm:$0xff]
    %v87 = vld [vmem:[%s2] sm:$0x1]
    %v89 = vlaneseq
    %v90 = vshrl.u32 %v89, 7
    %v91 = vsub.s32 0, %v90
    %v92 = vrot.slane %v87, %v91
    %vm94 = vcmask 130048
    %v96 = vsel %vm94, %v81, 0
    %v99 = vsel %vm94, %v82, 0
    %v102 = vsel %vm94, %v83, 0
    %v105 = vsel %vm94, %v84, 0
    %107 = vmatprep.subr.mxu0 0.0
    %108 = vmatpush1.msra.mxu0 %v85
    %109 = vmatprep.subr.mxu0 0.0
    %110 = vmatpush1.msra.mxu0 %v86
    %111 = vmatprep.subr.mxu0 0.0
    %112 = vmatpush1.msra.mxu0 0.0
    %113 = vmatprep.subr.mxu0 0.0
    %114 = vmatpush1.msra.mxu0 0.0
    %115 = vmatprep.subr.mxu0 0.0
    %116 = vmatpush1.msra.mxu0 0.0
    %117 = vmatprep.subr.mxu0 0.0
    %118 = vmatpush1.msra.mxu0 0.0
    %119 = vmatprep.subr.mxu0 0.0
    %120 = vmatpush1.msra.mxu0 0.0
    %121 = vmatprep.subr.mxu0 0.0
    %122 = vmatpush1.msra.mxu0 0.0
    %123 = vmatprep.subr.mxu0 0.0
    %124 = vmatpush1.msra.mxu0 0.0
    %125 = vmatprep.subr.mxu0 0.0
    %126 = vmatpush1.msra.mxu0 0.0
    %127 = vmatprep.subr.mxu0 0.0
    %128 = vmatpush1.msra.mxu0 0.0
    %129 = vmatprep.subr.mxu0 0.0
    %130 = vmatpush1.msra.mxu0 0.0
    %131 = vmatprep.subr.mxu0 0.0
    %132 = vmatpush1.msra.mxu0 0.0
    %133 = vmatprep.subr.mxu0 0.0
    %134 = vmatpush1.msra.mxu0 0.0
    %135 = vmatprep.subr.mxu0 0.0
    %136 = vmatpush1.msra.mxu0 0.0
    %137 = vmatprep.subr.mxu0 0.0
    %138 = vmatpush1.msra.mxu0 0.0
    %139 = vmatprep.subr.mxu0 0.0
    %140 = vmatpush1.msra.mxu0 0.0
    %141 = vmatprep.subr.mxu0 0.0
    %142 = vmatpush1.msra.mxu0 0.0
    %143 = vmatprep.subr.mxu0 0.0
    %144 = vmatpush1.msra.mxu0 0.0
    %145 = vmatprep.subr.mxu0 0.0
    %146 = vmatpush1.msra.mxu0 0.0
    %147 = vmatprep.subr.mxu0 0.0
    %148 = vmatpush1.msra.mxu0 0.0
    %149 = vmatprep.subr.mxu0 0.0
    %150 = vmatpush1.msra.mxu0 0.0
    %151 = vmatprep.subr.mxu0 0.0
    %152 = vmatpush1.msra.mxu0 0.0
    %153 = vmatprep.subr.mxu0 0.0
    %154 = vmatpush1.msra.mxu0 0.0
    %155 = vmatprep.subr.mxu0 0.0
    %156 = vmatpush1.msra.mxu0 0.0
    %157 = vmatprep.subr.mxu0 0.0
    %158 = vmatpush1.msra.mxu0 0.0
    %159 = vmatprep.subr.mxu0 0.0
    %160 = vmatpush1.msra.mxu0 0.0
    %161 = vmatprep.subr.mxu0 0.0
    %162 = vmatpush1.msra.mxu0 0.0
    %163 = vmatprep.subr.mxu0 0.0
    %164 = vmatpush1.msra.mxu0 0.0
    %165 = vmatprep.subr.mxu0 0.0
    %166 = vmatpush1.msra.mxu0 0.0
    %167 = vmatprep.subr.mxu0 0.0
    %168 = vmatpush1.msra.mxu0 0.0
    %169 = vmatprep.subr.mxu0 0.0
    %170 = vmatpush1.msra.mxu0 0.0
    %171 = vmatprep.mubr.f32.mxu0 0.0
    %172 = vmatmul.mubr.f32.gmra.mrb[0].mxu0 %v96
    %v173 = vpop.f32.mrb[0].mxu0
    %v174 = vadd.f32 %v92, %v173
    %v175 = vpop.f32.mrb[0].mxu0
    %176 = vmatprep.mubr.f32.mxu0 0.0
    %177 = vmatmul.mubr.f32.gmra.mrb[0].mxu0 %v99
    %v178 = vpop.f32.mrb[0].mxu0
    %v179 = vadd.f32 %v92, %v178
    %v180 = vpop.f32.mrb[0].mxu0
    %181 = vmatprep.mubr.f32.mxu0 0.0
    %182 = vmatmul.mubr.f32.gmra.mrb[0].mxu0 %v102
    %v183 = vpop.f32.mrb[0].mxu0
    %v184 = vadd.f32 %v92, %v183
    %v185 = vpop.f32.mrb[0].mxu0
    %186 = vmatprep.mubr.f32.mxu0 0.0
    %187 = vmatmul.mubr.f32.gmra.mrb[0].mxu0 %v105
    %v188 = vpop.f32.mrb[0].mxu0
    %v189 = vadd.f32 %v92, %v188
    %v190 = vpop.f32.mrb[0].mxu0
    %191 = vdwg.mxu0
    %v192 = vmax.f32 %v174, 0.0
    %v193 = vmax.f32 %v179, 0.0
    %v194 = vmax.f32 %v184, 0.0
    %v195 = vmax.f32 %v189, 0.0
    %v196 = vld [vmem:[%s3] sm:$0xff]
    %v197 = vld [vmem:[%s3 + $0x8] sm:$0xff]
    %v198 = vld [vmem:[%s3 + $0x10] sm:$0xff]
    %v199 = vld [vmem:[%s3 + $0x18] sm:$0xff]
    %v200 = vld [vmem:[%s4] sm:$0x1]
    %v201 = vld [vmem:[%s5] sm:$0xff]
    %v202 = vld [vmem:[%s5 + $0x8] sm:$0xff]
    %v203 = vld [vmem:[%s5 + $0x10] sm:$0xff]
    %v204 = vld [vmem:[%s5 + $0x18] sm:$0xff]
    %v205 = vld [vmem:[%s5 + $0x20] sm:$0xff]
    %v206 = vld [vmem:[%s5 + $0x28] sm:$0xff]
    %v207 = vld [vmem:[%s5 + $0x30] sm:$0xff]
    %v208 = vld [vmem:[%s5 + $0x38] sm:$0xff]
    %v209 = vld [vmem:[%s5 + $0x40] sm:$0xff]
    %v210 = vld [vmem:[%s5 + $0x48] sm:$0xff]
    %v211 = vld [vmem:[%s5 + $0x50] sm:$0xff]
    %v212 = vld [vmem:[%s5 + $0x58] sm:$0xff]
    %v213 = vld [vmem:[%s5 + $0x60] sm:$0xff]
    %v214 = vld [vmem:[%s5 + $0x68] sm:$0xff]
    %v215 = vld [vmem:[%s5 + $0x70] sm:$0xff]
    %v216 = vld [vmem:[%s5 + $0x78] sm:$0xff]
    %v217 = vld [vmem:[%s6] sm:$0x1]
    %v218 = vld [vmem:[%s7] sm:$0x1]
    %v219 = vld [vmem:[%s8] sm:$0x1]
    %v220 = vmul.f32 %v192, %v194
    %v221 = vmul.f32 %v193, %v195
    %vm222 = vcmask 261120
    %v224 = vsel %vm222, %v220, 0
    %v227 = vsel %vm222, %v221, 0
    %229 = vmatprep.subr.mxu0 0.0
    %230 = vmatpush1.msra.mxu0 %v196
    %231 = vmatprep.subr.mxu0 0.0
    %232 = vmatpush1.msra.mxu0 %v197
    %233 = vmatprep.subr.mxu0 0.0
    %234 = vmatpush1.msra.mxu0 %v198
    %235 = vmatprep.subr.mxu0 0.0
    %236 = vmatpush1.msra.mxu0 %v199
    %237 = vmatprep.subr.mxu0 0.0
    %238 = vmatpush1.msra.mxu0 0.0
    %239 = vmatprep.subr.mxu0 0.0
    %240 = vmatpush1.msra.mxu0 0.0
    %241 = vmatprep.subr.mxu0 0.0
    %242 = vmatpush1.msra.mxu0 0.0
    %243 = vmatprep.subr.mxu0 0.0
    %244 = vmatpush1.msra.mxu0 0.0
    %245 = vmatprep.subr.mxu0 0.0
    %246 = vmatpush1.msra.mxu0 0.0
    %247 = vmatprep.subr.mxu0 0.0
    %248 = vmatpush1.msra.mxu0 0.0
    %249 = vmatprep.subr.mxu0 0.0
    %250 = vmatpush1.msra.mxu0 0.0
    %251 = vmatprep.subr.mxu0 0.0
    %252 = vmatpush1.msra.mxu0 0.0
    %253 = vmatprep.subr.mxu0 0.0
    %254 = vmatpush1.msra.mxu0 0.0
    %255 = vmatprep.subr.mxu0 0.0
    %256 = vmatpush1.msra.mxu0 0.0
    %257 = vmatprep.subr.mxu0 0.0
    %258 = vmatpush1.msra.mxu0 0.0
    %259 = vmatprep.subr.mxu0 0.0
    %260 = vmatpush1.msra.mxu0 0.0
    %261 = vmatprep.subr.mxu0 0.0
    %262 = vmatpush1.msra.mxu0 0.0
    %263 = vmatprep.subr.mxu0 0.0
    %264 = vmatpush1.msra.mxu0 0.0
    %265 = vmatprep.subr.mxu0 0.0
    %266 = vmatpush1.msra.mxu0 0.0
    %267 = vmatprep.subr.mxu0 0.0
    %268 = vmatpush1.msra.mxu0 0.0
    %269 = vmatprep.subr.mxu0 0.0
    %270 = vmatpush1.msra.mxu0 0.0
    %271 = vmatprep.subr.mxu0 0.0
    %272 = vmatpush1.msra.mxu0 0.0
    %273 = vmatprep.subr.mxu0 0.0
    %274 = vmatpush1.msra.mxu0 0.0
    %275 = vmatprep.subr.mxu0 0.0
    %276 = vmatpush1.msra.mxu0 0.0
    %277 = vmatprep.subr.mxu0 0.0
    %278 = vmatpush1.msra.mxu0 0.0
    %279 = vmatprep.subr.mxu0 0.0
    %280 = vmatpush1.msra.mxu0 0.0
    %281 = vmatprep.subr.mxu0 0.0
    %282 = vmatpush1.msra.mxu0 0.0
    %283 = vmatprep.subr.mxu0 0.0
    %284 = vmatpush1.msra.mxu0 0.0
    %285 = vmatprep.subr.mxu0 0.0
    %286 = vmatpush1.msra.mxu0 0.0
    %287 = vmatprep.subr.mxu0 0.0
    %288 = vmatpush1.msra.mxu0 0.0
    %289 = vmatprep.subr.mxu0 0.0
    %290 = vmatpush1.msra.mxu0 0.0
    %291 = vmatprep.subr.mxu0 0.0
    %292 = vmatpush1.msra.mxu0 0.0
    %293 = vmatprep.mubr.f32.mxu0 0.0
    %294 = vmatmul.mubr.f32.gmra.mrb[0].mxu0 %v224
    %v295 = vpop.f32.mrb[0].mxu0
    %v296 = vadd.f32 0.0, %v295
    %v297 = vpop.f32.mrb[0].mxu0
    %298 = vmatprep.mubr.f32.mxu0 0.0
    %299 = vmatmul.mubr.f32.gmra.mrb[0].mxu0 %v227
    %v300 = vpop.f32.mrb[0].mxu0
    %v301 = vadd.f32 0.0, %v300
    %v302 = vpop.f32.mrb[0].mxu0
    %303 = vdwg.mxu0
    %v304 = vtanh.pop %v296
    %v305 = vtanh.pop %v301
    %v307 = vlaneseq
    %v308 = vshrl.u32 %v307, 7
    %v309 = vsub.s32 0, %v308
    %v310 = vrot.slane %v200, %v309
    %v312 = vmul.f32 %v304, %v310
    %v313 = vmul.f32 %v305, %v310
    %vm314 = vcmask 64512
    %v315 = vsel %vm314, %v312, 0.0
    %316 = vadd.xlane.f32.xlu0 %v315
    %v317 = vpop.xlane.xlu0 %316
    %v318 = vsel %vm314, %v313, 0.0
    %319 = vadd.xlane.f32.xlu0 %v318
    %v320 = vpop.xlane.xlu0 %319
    %v321 = vmax.f32 %v317, %v320
    %v322 = vrot.slane %v321, 4
    %v323 = vmax.f32 %v321, %v322
    %v324 = vrot.slane %v323, 2
    %v325 = vmax.f32 %v323, %v324
    %v326 = vrot.slane %v325, 1
    %v327 = vmax.f32 %v325, %v326
    %s328 = vtos %v327
    %v329 = vstv %s328
    %v330 = vsub.f32 %v317, %v329
    %v331 = vsub.f32 %v320, %v329
    %v332 = vmul.f32 %v330, 1.442695
    %v333 = vpow.pop %v332
    %v334 = vmul.f32 %v331, 1.442695
    %v335 = vpow.pop %v334
    %v336 = vadd.f32 %v333, %v335
    %v337 = vrcp.pop %v336
    %v338 = vmul.f32 %v333, %v337
    %v339 = vmul.f32 %v335, %v337
    %v340 = vmul.f32 %v192, %v338
    %v341 = vmul.f32 %v193, %v339
    %v342 = vsub.f32 %v194, %v340
    %v343 = vsub.f32 %v195, %v341
    %v344 = vmul.f32 %v194, %v340
    %v345 = vmul.f32 %v195, %v341
    %348 = vrot.lane.b32.xlu0 %v340, 32
    %v349 = vpop.permute.xlu0 %348
    %350 = vrot.lane.b32.xlu0 %v341, 32
    %v351 = vpop.permute.xlu0 %350
    %356 = vrot.lane.b32.xlu0 %v342, 64
    %v357 = vpop.permute.xlu0 %356
    %358 = vrot.lane.b32.xlu0 %v343, 64
    %v359 = vpop.permute.xlu0 %358
    %364 = vrot.lane.b32.xlu0 %v344, 96
    %v365 = vpop.permute.xlu0 %364
    %366 = vrot.lane.b32.xlu0 %v345, 96
    %v367 = vpop.permute.xlu0 %366
    %v370 = vsel %vm222, %v194, %v349
    %v371 = vsel %vm222, %v195, %v351
    %vm372 = vcmask 523264
    %v373 = vsel %vm372, %v370, %v357
    %v374 = vsel %vm372, %v371, %v359
    %vm375 = vcmask 785408
    %v376 = vsel %vm375, %v373, %v365
    %v377 = vsel %vm375, %v374, %v367
    %v379 = vlaneseq
    %v380 = vshrl.u32 %v379, 7
    %v381 = vsub.s32 0, %v380
    %v382 = vrot.slane %v217, %v381
    %384 = vmatprep.subr.mxu0 0.0
    %385 = vmatpush1.msra.mxu0 %v201
    %386 = vmatprep.subr.mxu0 0.0
    %387 = vmatpush1.msra.mxu0 %v202
    %388 = vmatprep.subr.mxu0 0.0
    %389 = vmatpush1.msra.mxu0 %v203
    %390 = vmatprep.subr.mxu0 0.0
    %391 = vmatpush1.msra.mxu0 %v204
    %392 = vmatprep.subr.mxu0 0.0
    %393 = vmatpush1.msra.mxu0 %v205
    %394 = vmatprep.subr.mxu0 0.0
    %395 = vmatpush1.msra.mxu0 %v206
    %396 = vmatprep.subr.mxu0 0.0
    %397 = vmatpush1.msra.mxu0 %v207
    %398 = vmatprep.subr.mxu0 0.0
    %399 = vmatpush1.msra.mxu0 %v208
    %400 = vmatprep.subr.mxu0 0.0
    %401 = vmatpush1.msra.mxu0 %v209
    %402 = vmatprep.subr.mxu0 0.0
    %403 = vmatpush1.msra.mxu0 %v210
    %404 = vmatprep.subr.mxu0 0.0
    %405 = vmatpush1.msra.mxu0 %v211
    %406 = vmatprep.subr.mxu0 0.0
    %407 = vmatpush1.msra.mxu0 %v212
    %408 = vmatprep.subr.mxu0 0.0
    %409 = vmatpush1.msra.mxu0 %v213
    %410 = vmatprep.subr.mxu0 0.0
    %411 = vmatpush1.msra.mxu0 %v214
    %412 = vmatprep.subr.mxu0 0.0
    %413 = vmatpush1.msra.mxu0 %v215
    %414 = vmatprep.subr.mxu0 0.0
    %415 = vmatpush1.msra.mxu0 %v216
    %416 = vmatprep.subr.mxu0 0.0
    %417 = vmatpush1.msra.mxu0 0.0
    %418 = vmatprep.subr.mxu0 0.0
    %419 = vmatpush1.msra.mxu0 0.0
    %420 = vmatprep.subr.mxu0 0.0
    %421 = vmatpush1.msra.mxu0 0.0
    %422 = vmatprep.subr.mxu0 0.0
    %423 = vmatpush1.msra.mxu0 0.0
    %424 = vmatprep.subr.mxu0 0.0
    %425 = vmatpush1.msra.mxu0 0.0
    %426 = vmatprep.subr.mxu0 0.0
    %427 = vmatpush1.msra.mxu0 0.0
    %428 = vmatprep.subr.mxu0 0.0
    %429 = vmatpush1.msra.mxu0 0.0
    %430 = vmatprep.subr.mxu0 0.0
    %431 = vmatpush1.msra.mxu0 0.0
    %432 = vmatprep.subr.mxu0 0.0
    %433 = vmatpush1.msra.mxu0 0.0
    %434 = vmatprep.subr.mxu0 0.0
    %435 = vmatpush1.msra.mxu0 0.0
    %436 = vmatprep.subr.mxu0 0.0
    %437 = vmatpush1.msra.mxu0 0.0
    %438 = vmatprep.subr.mxu0 0.0
    %439 = vmatpush1.msra.mxu0 0.0
    %440 = vmatprep.subr.mxu0 0.0
    %441 = vmatpush1.msra.mxu0 0.0
    %442 = vmatprep.subr.mxu0 0.0
    %443 = vmatpush1.msra.mxu0 0.0
    %444 = vmatprep.subr.mxu0 0.0
    %445 = vmatpush1.msra.mxu0 0.0
    %446 = vmatprep.subr.mxu0 0.0
    %447 = vmatpush1.msra.mxu0 0.0
    %448 = vmatprep.mubr.f32.mxu0 0.0
    %449 = vmatmul.mubr.f32.gmra.mrb[0].mxu0 %v376
    %v450 = vpop.f32.mrb[0].mxu0
    %v451 = vadd.f32 %v382, %v450
    %v452 = vpop.f32.mrb[0].mxu0
    %453 = vmatprep.mubr.f32.mxu0 0.0
    %454 = vmatmul.mubr.f32.gmra.mrb[0].mxu0 %v377
    %v455 = vpop.f32.mrb[0].mxu0
    %v456 = vadd.f32 %v382, %v455
    %v457 = vpop.f32.mrb[0].mxu0
    %458 = vdwg.mxu0
    %v459 = vmax.f32 %v451, 0.0
    %v460 = vmax.f32 %v456, 0.0
    %v461 = vsel %vm222, %v459, 0.0
    %462 = vadd.xlane.f32.xlu0 %v461
    %v463 = vpop.xlane.xlu0 %462
    %v464 = vsel %vm222, %v460, 0.0
    %465 = vadd.xlane.f32.xlu0 %v464
    %v466 = vpop.xlane.xlu0 %465
    %v467 = vrcp.pop 32.0
    %v468 = vmul.f32 %v463, %v467
    %v469 = vmul.f32 %v466, %v467
    %v470 = vsub.f32 %v459, %v468
    %v471 = vsub.f32 %v460, %v469
    %v472 = vmul.f32 %v470, %v470
    %v473 = vmul.f32 %v471, %v471
    %v474 = vsel %vm222, %v472, 0.0
    %475 = vadd.xlane.f32.xlu0 %v474
    %v476 = vpop.xlane.xlu0 %475
    %v477 = vsel %vm222, %v473, 0.0
    %478 = vadd.xlane.f32.xlu0 %v477
    %v479 = vpop.xlane.xlu0 %478
    %v480 = vmul.f32 %v476, %v467
    %v481 = vmul.f32 %v479, %v467
    %v482 = vadd.f32 %v480, 1e-05
    %v483 = vadd.f32 %v481, 1e-05
    %v484 = vrsqrt.pop %v482
    %v485 = vrsqrt.pop %v483
    %v486 = vmul.f32 %v470, %v484
    %v487 = vmul.f32 %v471, %v485
    %v489 = vlaneseq
    %v490 = vshrl.u32 %v489, 7
    %v491 = vsub.s32 0, %v490
    %v492 = vrot.slane %v218, %v491
    %v494 = vmul.f32 %v486, %v492
    %v495 = vmul.f32 %v487, %v492
    %v497 = vlaneseq
    %v498 = vshrl.u32 %v497, 7
    %v499 = vsub.s32 0, %v498
    %v500 = vrot.slane %v219, %v499
    %v502 = vadd.f32 %v494, %v500
    %v503 = vadd.f32 %v495, %v500
    %v504 = vld [vmem:[%s9] sm:$0xff]
    %v505 = vld [vmem:[%s9 + $0x8] sm:$0xff]
    %v506 = vld [vmem:[%s9 + $0x10] sm:$0xff]
    %v507 = vld [vmem:[%s9 + $0x18] sm:$0xff]
    %v508 = vld [vmem:[%s10] sm:$0x1]
    %v509 = vld [vmem:[%s11] sm:$0xff]
    %v510 = vld [vmem:[%s11 + $0x8] sm:$0xff]
    %v511 = vld [vmem:[%s11 + $0x10] sm:$0xff]
    %v512 = vld [vmem:[%s11 + $0x18] sm:$0xff]
    %v513 = vld [vmem:[%s11 + $0x20] sm:$0xff]
    %v514 = vld [vmem:[%s11 + $0x28] sm:$0xff]
    %v515 = vld [vmem:[%s11 + $0x30] sm:$0xff]
    %v516 = vld [vmem:[%s11 + $0x38] sm:$0xff]
    %v517 = vld [vmem:[%s11 + $0x40] sm:$0xff]
    %v518 = vld [vmem:[%s11 + $0x48] sm:$0xff]
    %v519 = vld [vmem:[%s11 + $0x50] sm:$0xff]
    %v520 = vld [vmem:[%s11 + $0x58] sm:$0xff]
    %v521 = vld [vmem:[%s11 + $0x60] sm:$0xff]
    %v522 = vld [vmem:[%s11 + $0x68] sm:$0xff]
    %v523 = vld [vmem:[%s11 + $0x70] sm:$0xff]
    %v524 = vld [vmem:[%s11 + $0x78] sm:$0xff]
    %v525 = vld [vmem:[%s12] sm:$0x1]
    %v526 = vld [vmem:[%s13] sm:$0x1]
    %v527 = vld [vmem:[%s14] sm:$0x1]
    %v528 = vmul.f32 %v502, %v192
    %v529 = vmul.f32 %v503, %v193
    %v531 = vsel %vm222, %v528, 0
    %v534 = vsel %vm222, %v529, 0
    %536 = vmatprep.subr.mxu0 0.0
    %537 = vmatpush1.msra.mxu0 %v504
    %538 = vmatprep.subr.mxu0 0.0
    %539 = vmatpush1.msra.mxu0 %v505
    %540 = vmatprep.subr.mxu0 0.0
    %541 = vmatpush1.msra.mxu0 %v506
    %542 = vmatprep.subr.mxu0 0.0
    %543 = vmatpush1.msra.mxu0 %v507
    %544 = vmatprep.subr.mxu0 0.0
    %545 = vmatpush1.msra.mxu0 0.0
    %546 = vmatprep.subr.mxu0 0.0
    %547 = vmatpush1.msra.mxu0 0.0
    %548 = vmatprep.subr.mxu0 0.0
    %549 = vmatpush1.msra.mxu0 0.0
    %550 = vmatprep.subr.mxu0 0.0
    %551 = vmatpush1.msra.mxu0 0.0
    %552 = vmatprep.subr.mxu0 0.0
    %553 = vmatpush1.msra.mxu0 0.0
    %554 = vmatprep.subr.mxu0 0.0
    %555 = vmatpush1.msra.mxu0 0.0
    %556 = vmatprep.subr.mxu0 0.0
    %557 = vmatpush1.msra.mxu0 0.0
    %558 = vmatprep.subr.mxu0 0.0
    %559 = vmatpush1.msra.mxu0 0.0
    %560 = vmatprep.subr.mxu0 0.0
    %561 = vmatpush1.msra.mxu0 0.0
    %562 = vmatprep.subr.mxu0 0.0
    %563 = vmatpush1.msra.mxu0 0.0
    %564 = vmatprep.subr.mxu0 0.0
    %565 = vmatpush1.msra.mxu0 0.0
    %566 = vmatprep.subr.mxu0 0.0
    %567 = vmatpush1.msra.mxu0 0.0
    %568 = vmatprep.subr.mxu0 0.0
    %569 = vmatpush1.msra.mxu0 0.0
    %570 = vmatprep.subr.mxu0 0.0
    %571 = vmatpush1.msra.mxu0 0.0
    %572 = vmatprep.subr.mxu0 0.0
    %573 = vmatpush1.msra.mxu0 0.0
    %574 = vmatprep.subr.mxu0 0.0
    %575 = vmatpush1.msra.mxu0 0.0
    %576 = vmatprep.subr.mxu0 0.0
    %577 = vmatpush1.msra.mxu0 0.0
    %578 = vmatprep.subr.mxu0 0.0
    %579 = vmatpush1.msra.mxu0 0.0
    %580 = vmatprep.subr.mxu0 0.0
    %581 = vmatpush1.msra.mxu0 0.0
    %582 = vmatprep.subr.mxu0 0.0
    %583 = vmatpush1.msra.mxu0 0.0
    %584 = vmatprep.subr.mxu0 0.0
    %585 = vmatpush1.msra.mxu0 0.0
    %586 = vmatprep.subr.mxu0 0.0
    %587 = vmatpush1.msra.mxu0 0.0
    %588 = vmatprep.subr.mxu0 0.0
    %589 = vmatpush1.msra.mxu0 0.0
    %590 = vmatprep.subr.mxu0 0.0
    %591 = vmatpush1.msra.mxu0 0.0
    %592 = vmatprep.subr.mxu0 0.0
    %593 = vmatpush1.msra.mxu0 0.0
    %594 = vmatprep.subr.mxu0 0.0
    %595 = vmatpush1.msra.mxu0 0.0
    %596 = vmatprep.subr.mxu0 0.0
    %597 = vmatpush1.msra.mxu0 0.0
    %598 = vmatprep.subr.mxu0 0.0
    %599 = vmatpush1.msra.mxu0 0.0
    %600 = vmatprep.mubr.f32.mxu0 0.0
    %601 = vmatmul.mubr.f32.gmra.mrb[0].mxu0 %v531
    %v602 = vpop.f32.mrb[0].mxu0
    %v603 = vadd.f32 0.0, %v602
    %v604 = vpop.f32.mrb[0].mxu0
    %605 = vmatprep.mubr.f32.mxu0 0.0
    %606 = vmatmul.mubr.f32.gmra.mrb[0].mxu0 %v534
    %v607 = vpop.f32.mrb[0].mxu0
    %v608 = vadd.f32 0.0, %v607
    %v609 = vpop.f32.mrb[0].mxu0
    %610 = vdwg.mxu0
    %v611 = vtanh.pop %v603
    %v612 = vtanh.pop %v608
    %v614 = vlaneseq
    %v615 = vshrl.u32 %v614, 7
    %v616 = vsub.s32 0, %v615
    %v617 = vrot.slane %v508, %v616
    %v619 = vmul.f32 %v611, %v617
    %v620 = vmul.f32 %v612, %v617
    %v621 = vsel %vm314, %v619, 0.0
    %622 = vadd.xlane.f32.xlu0 %v621
    %v623 = vpop.xlane.xlu0 %622
    %v624 = vsel %vm314, %v620, 0.0
    %625 = vadd.xlane.f32.xlu0 %v624
    %v626 = vpop.xlane.xlu0 %625
    %v627 = vmax.f32 %v623, %v626
    %v628 = vrot.slane %v627, 4
    %v629 = vmax.f32 %v627, %v628
    %v630 = vrot.slane %v629, 2
    %v631 = vmax.f32 %v629, %v630
    %v632 = vrot.slane %v631, 1
    %v633 = vmax.f32 %v631, %v632
    %s634 = vtos %v633
    %v635 = vstv %s634
    %v636 = vsub.f32 %v623, %v635
    %v637 = vsub.f32 %v626, %v635
    %v638 = vmul.f32 %v636, 1.442695
    %v639 = vpow.pop %v638
    %v640 = vmul.f32 %v637, 1.442695
    %v641 = vpow.pop %v640
    %v642 = vadd.f32 %v639, %v641
    %v643 = vrcp.pop %v642
    %v644 = vmul.f32 %v639, %v643
    %v645 = vmul.f32 %v641, %v643
    %v646 = vmul.f32 %v502, %v644
    %v647 = vmul.f32 %v503, %v645
    %v648 = vsub.f32 %v192, %v646
    %v649 = vsub.f32 %v193, %v647
    %v650 = vmul.f32 %v192, %v646
    %v651 = vmul.f32 %v193, %v647
    %654 = vrot.lane.b32.xlu0 %v646, 32
    %v655 = vpop.permute.xlu0 %654
    %656 = vrot.lane.b32.xlu0 %v647, 32
    %v657 = vpop.permute.xlu0 %656
    %662 = vrot.lane.b32.xlu0 %v648, 64
    %v663 = vpop.permute.xlu0 %662
    %664 = vrot.lane.b32.xlu0 %v649, 64
    %v665 = vpop.permute.xlu0 %664
    %670 = vrot.lane.b32.xlu0 %v650, 96
    %v671 = vpop.permute.xlu0 %670
    %672 = vrot.lane.b32.xlu0 %v651, 96
    %v673 = vpop.permute.xlu0 %672
    %v676 = vsel %vm222, %v192, %v655
    %v677 = vsel %vm222, %v193, %v657
    %v678 = vsel %vm372, %v676, %v663
    %v679 = vsel %vm372, %v677, %v665
    %v680 = vsel %vm375, %v678, %v671
    %v681 = vsel %vm375, %v679, %v673
    %v683 = vlaneseq
    %v684 = vshrl.u32 %v683, 7
    %v685 = vsub.s32 0, %v684
    %v686 = vrot.slane %v525, %v685
    %688 = vmatprep.subr.mxu0 0.0
    %689 = vmatpush1.msra.mxu0 %v509
    %690 = vmatprep.subr.mxu0 0.0
    %691 = vmatpush1.msra.mxu0 %v510
    %692 = vmatprep.subr.mxu0 0.0
    %693 = vmatpush1.msra.mxu0 %v511
    %694 = vmatprep.subr.mxu0 0.0
    %695 = vmatpush1.msra.mxu0 %v512
    %696 = vmatprep.subr.mxu0 0.0
    %697 = vmatpush1.msra.mxu0 %v513
    %698 = vmatprep.subr.mxu0 0.0
    %699 = vmatpush1.msra.mxu0 %v514
    %700 = vmatprep.subr.mxu0 0.0
    %701 = vmatpush1.msra.mxu0 %v515
    %702 = vmatprep.subr.mxu0 0.0
    %703 = vmatpush1.msra.mxu0 %v516
    %704 = vmatprep.subr.mxu0 0.0
    %705 = vmatpush1.msra.mxu0 %v517
    %706 = vmatprep.subr.mxu0 0.0
    %707 = vmatpush1.msra.mxu0 %v518
    %708 = vmatprep.subr.mxu0 0.0
    %709 = vmatpush1.msra.mxu0 %v519
    %710 = vmatprep.subr.mxu0 0.0
    %711 = vmatpush1.msra.mxu0 %v520
    %712 = vmatprep.subr.mxu0 0.0
    %713 = vmatpush1.msra.mxu0 %v521
    %714 = vmatprep.subr.mxu0 0.0
    %715 = vmatpush1.msra.mxu0 %v522
    %716 = vmatprep.subr.mxu0 0.0
    %717 = vmatpush1.msra.mxu0 %v523
    %718 = vmatprep.subr.mxu0 0.0
    %719 = vmatpush1.msra.mxu0 %v524
    %720 = vmatprep.subr.mxu0 0.0
    %721 = vmatpush1.msra.mxu0 0.0
    %722 = vmatprep.subr.mxu0 0.0
    %723 = vmatpush1.msra.mxu0 0.0
    %724 = vmatprep.subr.mxu0 0.0
    %725 = vmatpush1.msra.mxu0 0.0
    %726 = vmatprep.subr.mxu0 0.0
    %727 = vmatpush1.msra.mxu0 0.0
    %728 = vmatprep.subr.mxu0 0.0
    %729 = vmatpush1.msra.mxu0 0.0
    %730 = vmatprep.subr.mxu0 0.0
    %731 = vmatpush1.msra.mxu0 0.0
    %732 = vmatprep.subr.mxu0 0.0
    %733 = vmatpush1.msra.mxu0 0.0
    %734 = vmatprep.subr.mxu0 0.0
    %735 = vmatpush1.msra.mxu0 0.0
    %736 = vmatprep.subr.mxu0 0.0
    %737 = vmatpush1.msra.mxu0 0.0
    %738 = vmatprep.subr.mxu0 0.0
    %739 = vmatpush1.msra.mxu0 0.0
    %740 = vmatprep.subr.mxu0 0.0
    %741 = vmatpush1.msra.mxu0 0.0
    %742 = vmatprep.subr.mxu0 0.0
    %743 = vmatpush1.msra.mxu0 0.0
    %744 = vmatprep.subr.mxu0 0.0
    %745 = vmatpush1.msra.mxu0 0.0
    %746 = vmatprep.subr.mxu0 0.0
    %747 = vmatpush1.msra.mxu0 0.0
    %748 = vmatprep.subr.mxu0 0.0
    %749 = vmatpush1.msra.mxu0 0.0
    %750 = vmatprep.subr.mxu0 0.0
    %751 = vmatpush1.msra.mxu0 0.0
    %752 = vmatprep.mubr.f32.mxu0 0.0
    %753 = vmatmul.mubr.f32.gmra.mrb[0].mxu0 %v680
    %v754 = vpop.f32.mrb[0].mxu0
    %v755 = vadd.f32 %v686, %v754
    %v756 = vpop.f32.mrb[0].mxu0
    %757 = vmatprep.mubr.f32.mxu0 0.0
    %758 = vmatmul.mubr.f32.gmra.mrb[0].mxu0 %v681
    %v759 = vpop.f32.mrb[0].mxu0
    %v760 = vadd.f32 %v686, %v759
    %v761 = vpop.f32.mrb[0].mxu0
    %762 = vdwg.mxu0
    %v763 = vmax.f32 %v755, 0.0
    %v764 = vmax.f32 %v760, 0.0
    %v765 = vsel %vm222, %v763, 0.0
    %766 = vadd.xlane.f32.xlu0 %v765
    %v767 = vpop.xlane.xlu0 %766
    %v768 = vsel %vm222, %v764, 0.0
    %769 = vadd.xlane.f32.xlu0 %v768
    %v770 = vpop.xlane.xlu0 %769
    %v771 = vmul.f32 %v767, %v467
    %v772 = vmul.f32 %v770, %v467
    %v773 = vsub.f32 %v763, %v771
    %v774 = vsub.f32 %v764, %v772
    %v775 = vmul.f32 %v773, %v773
    %v776 = vmul.f32 %v774, %v774
    %v777 = vsel %vm222, %v775, 0.0
    %778 = vadd.xlane.f32.xlu0 %v777
    %v779 = vpop.xlane.xlu0 %778
    %v780 = vsel %vm222, %v776, 0.0
    %781 = vadd.xlane.f32.xlu0 %v780
    %v782 = vpop.xlane.xlu0 %781
    %v783 = vmul.f32 %v779, %v467
    %v784 = vmul.f32 %v782, %v467
    %v785 = vadd.f32 %v783, 1e-05
    %v786 = vadd.f32 %v784, 1e-05
    %v787 = vrsqrt.pop %v785
    %v788 = vrsqrt.pop %v786
    %v789 = vmul.f32 %v773, %v787
    %v790 = vmul.f32 %v774, %v788
    %v792 = vlaneseq
    %v793 = vshrl.u32 %v792, 7
    %v794 = vsub.s32 0, %v793
    %v795 = vrot.slane %v526, %v794
    %v797 = vmul.f32 %v789, %v795
    %v798 = vmul.f32 %v790, %v795
    %v800 = vlaneseq
    %v801 = vshrl.u32 %v800, 7
    %v802 = vsub.s32 0, %v801
    %v803 = vrot.slane %v527, %v802
    %v805 = vadd.f32 %v797, %v803
    %v806 = vadd.f32 %v798, %v803
    %v807 = vld [vmem:[%s15] sm:$0xff]
    %v808 = vld [vmem:[%s15 + $0x8] sm:$0xff]
    %v809 = vld [vmem:[%s15 + $0x10] sm:$0xff]
    %v810 = vld [vmem:[%s15 + $0x18] sm:$0xff]
    %v811 = vld [vmem:[%s15 + $0x20] sm:$0xff]
    %v812 = vld [vmem:[%s15 + $0x28] sm:$0xff]
    %v813 = vld [vmem:[%s15 + $0x30] sm:$0xff]
    %v814 = vld [vmem:[%s15 + $0x38] sm:$0xff]
    %v815 = vld [vmem:[%s18] sm:$0xff]
    %v816 = vld [vmem:[%s18 + $0x8] sm:$0xff]
    %v817 = vld [vmem:[%s18 + $0x10] sm:$0xff]
    %v818 = vld [vmem:[%s18 + $0x18] sm:$0xff]
    %v819 = vld [vmem:[%s18 + $0x20] sm:$0xff]
    %v820 = vld [vmem:[%s18 + $0x28] sm:$0xff]
    %v821 = vld [vmem:[%s18 + $0x30] sm:$0xff]
    %v822 = vld [vmem:[%s18 + $0x38] sm:$0xff]
    %v824 = vsel %vm222, %v502, 0
    %v827 = vsel %vm222, %v805, 0
    %v830 = vsel %vm222, %v503, 0
    %v833 = vsel %vm222, %v806, 0
    %835 = vmatprep.subr.mxu0 0.0
    %836 = vmatpush1.msra.mxu0 %v811
    %837 = vmatprep.subr.mxu0 0.0
    %838 = vmatpush1.msra.mxu0 %v812
    %839 = vmatprep.subr.mxu0 0.0
    %840 = vmatpush1.msra.mxu0 %v813
    %841 = vmatprep.subr.mxu0 0.0
    %842 = vmatpush1.msra.mxu0 %v814
    %843 = vmatprep.subr.mxu0 0.0
    %844 = vmatpush1.msra.mxu0 0.0
    %845 = vmatprep.subr.mxu0 0.0
    %846 = vmatpush1.msra.mxu0 0.0
    %847 = vmatprep.subr.mxu0 0.0
    %848 = vmatpush1.msra.mxu0 0.0
    %849 = vmatprep.subr.mxu0 0.0
    %850 = vmatpush1.msra.mxu0 0.0
    %851 = vmatprep.subr.mxu0 0.0
    %852 = vmatpush1.msra.mxu0 0.0
    %853 = vmatprep.subr.mxu0 0.0
    %854 = vmatpush1.msra.mxu0 0.0
    %855 = vmatprep.subr.mxu0 0.0
    %856 = vmatpush1.msra.mxu0 0.0
    %857 = vmatprep.subr.mxu0 0.0
    %858 = vmatpush1.msra.mxu0 0.0
    %859 = vmatprep.subr.mxu0 0.0
    %860 = vmatpush1.msra.mxu0 0.0
    %861 = vmatprep.subr.mxu0 0.0
    %862 = vmatpush1.msra.mxu0 0.0
    %863 = vmatprep.subr.mxu0 0.0
    %864 = vmatpush1.msra.mxu0 0.0
    %865 = vmatprep.subr.mxu0 0.0
    %866 = vmatpush1.msra.mxu0 0.0
    %867 = vmatprep.subr.mxu0 0.0
    %868 = vmatpush1.msra.mxu0 0.0
    %869 = vmatprep.subr.mxu0 0.0
    %870 = vmatpush1.msra.mxu0 0.0
    %871 = vmatprep.subr.mxu0 0.0
    %872 = vmatpush1.msra.mxu0 0.0
    %873 = vmatprep.subr.mxu0 0.0
    %874 = vmatpush1.msra.mxu0 0.0
    %875 = vmatprep.subr.mxu0 0.0
    %876 = vmatpush1.msra.mxu0 0.0
    %877 = vmatprep.subr.mxu0 0.0
    %878 = vmatpush1.msra.mxu0 0.0
    %879 = vmatprep.subr.mxu0 0.0
    %880 = vmatpush1.msra.mxu0 0.0
    %881 = vmatprep.subr.mxu0 0.0
    %882 = vmatpush1.msra.mxu0 0.0
    %883 = vmatprep.subr.mxu0 0.0
    %884 = vmatpush1.msra.mxu0 0.0
    %885 = vmatprep.subr.mxu0 0.0
    %886 = vmatpush1.msra.mxu0 0.0
    %887 = vmatprep.subr.mxu0 0.0
    %888 = vmatpush1.msra.mxu0 0.0
    %889 = vmatprep.subr.mxu0 0.0
    %890 = vmatpush1.msra.mxu0 0.0
    %891 = vmatprep.subr.mxu0 0.0
    %892 = vmatpush1.msra.mxu0 0.0
    %893 = vmatprep.subr.mxu0 0.0
    %894 = vmatpush1.msra.mxu0 0.0
    %895 = vmatprep.subr.mxu0 0.0
    %896 = vmatpush1.msra.mxu0 0.0
    %897 = vmatprep.subr.mxu0 0.0
    %898 = vmatpush1.msra.mxu0 0.0
    %899 = vmatprep.mubr.f32.mxu0 0.0
    %900 = vmatmul.mubr.f32.gmra.mrb[0].mxu0 %v824
    %v901 = vpop.f32.mrb[0].mxu0
    %v902 = vadd.f32 0.0, %v901
    %v903 = vpop.f32.mrb[0].mxu0
    %904 = vmatprep.mubr.f32.mxu0 0.0
    %905 = vmatmul.mubr.f32.gmra.mrb[0].mxu0 %v827
    %v906 = vpop.f32.mrb[0].mxu0
    %v907 = vadd.f32 0.0, %v906
    %v908 = vpop.f32.mrb[0].mxu0
    %909 = vmatprep.mubr.f32.mxu0 0.0
    %910 = vmatmul.mubr.f32.gmra.mrb[0].mxu0 %v830
    %v911 = vpop.f32.mrb[0].mxu0
    %v912 = vadd.f32 0.0, %v911
    %v913 = vpop.f32.mrb[0].mxu0
    %914 = vmatprep.mubr.f32.mxu0 0.0
    %915 = vmatmul.mubr.f32.gmra.mrb[0].mxu0 %v833
    %v916 = vpop.f32.mrb[0].mxu0
    %v917 = vadd.f32 0.0, %v916
    %v918 = vpop.f32.mrb[0].mxu0
    %919 = vdwg.mxu0
    %v921 = vsel %vm222, %v194, 0
    %v924 = vsel %vm222, %v192, 0
    %v927 = vsel %vm222, %v195, 0
    %v930 = vsel %vm222, %v193, 0
    %932 = vmatprep.subr.mxu0 0.0
    %933 = vmatpush1.msra.mxu0 %v807
    %934 = vmatprep.subr.mxu0 0.0
    %935 = vmatpush1.msra.mxu0 %v808
    %936 = vmatprep.subr.mxu0 0.0
    %937 = vmatpush1.msra.mxu0 %v809
    %938 = vmatprep.subr.mxu0 0.0
    %939 = vmatpush1.msra.mxu0 %v810
    %940 = vmatprep.subr.mxu0 0.0
    %941 = vmatpush1.msra.mxu0 0.0
    %942 = vmatprep.subr.mxu0 0.0
    %943 = vmatpush1.msra.mxu0 0.0
    %944 = vmatprep.subr.mxu0 0.0
    %945 = vmatpush1.msra.mxu0 0.0
    %946 = vmatprep.subr.mxu0 0.0
    %947 = vmatpush1.msra.mxu0 0.0
    %948 = vmatprep.subr.mxu0 0.0
    %949 = vmatpush1.msra.mxu0 0.0
    %950 = vmatprep.subr.mxu0 0.0
    %951 = vmatpush1.msra.mxu0 0.0
    %952 = vmatprep.subr.mxu0 0.0
    %953 = vmatpush1.msra.mxu0 0.0
    %954 = vmatprep.subr.mxu0 0.0
    %955 = vmatpush1.msra.mxu0 0.0
    %956 = vmatprep.subr.mxu0 0.0
    %957 = vmatpush1.msra.mxu0 0.0
    %958 = vmatprep.subr.mxu0 0.0
    %959 = vmatpush1.msra.mxu0 0.0
    %960 = vmatprep.subr.mxu0 0.0
    %961 = vmatpush1.msra.mxu0 0.0
    %962 = vmatprep.subr.mxu0 0.0
    %963 = vmatpush1.msra.mxu0 0.0
    %964 = vmatprep.subr.mxu0 0.0
    %965 = vmatpush1.msra.mxu0 0.0
    %966 = vmatprep.subr.mxu0 0.0
    %967 = vmatpush1.msra.mxu0 0.0
    %968 = vmatprep.subr.mxu0 0.0
    %969 = vmatpush1.msra.mxu0 0.0
    %970 = vmatprep.subr.mxu0 0.0
    %971 = vmatpush1.msra.mxu0 0.0
    %972 = vmatprep.subr.mxu0 0.0
    %973 = vmatpush1.msra.mxu0 0.0
    %974 = vmatprep.subr.mxu0 0.0
    %975 = vmatpush1.msra.mxu0 0.0
    %976 = vmatprep.subr.mxu0 0.0
    %977 = vmatpush1.msra.mxu0 0.0
    %978 = vmatprep.subr.mxu0 0.0
    %979 = vmatpush1.msra.mxu0 0.0
    %980 = vmatprep.subr.mxu0 0.0
    %981 = vmatpush1.msra.mxu0 0.0
    %982 = vmatprep.subr.mxu0 0.0
    %983 = vmatpush1.msra.mxu0 0.0
    %984 = vmatprep.subr.mxu0 0.0
    %985 = vmatpush1.msra.mxu0 0.0
    %986 = vmatprep.subr.mxu0 0.0
    %987 = vmatpush1.msra.mxu0 0.0
    %988 = vmatprep.subr.mxu0 0.0
    %989 = vmatpush1.msra.mxu0 0.0
    %990 = vmatprep.subr.mxu0 0.0
    %991 = vmatpush1.msra.mxu0 0.0
    %992 = vmatprep.subr.mxu0 0.0
    %993 = vmatpush1.msra.mxu0 0.0
    %994 = vmatprep.subr.mxu0 0.0
    %995 = vmatpush1.msra.mxu0 0.0
    %996 = vmatprep.mubr.f32.mxu0 0.0
    %997 = vmatmul.mubr.f32.gmra.mrb[0].mxu0 %v921
    %v998 = vpop.f32.mrb[0].mxu0
    %v999 = vadd.f32 %v902, %v998
    %v1000 = vpop.f32.mrb[0].mxu0
    %1001 = vmatprep.mubr.f32.mxu0 0.0
    %1002 = vmatmul.mubr.f32.gmra.mrb[0].mxu0 %v924
    %v1003 = vpop.f32.mrb[0].mxu0
    %v1004 = vadd.f32 %v907, %v1003
    %v1005 = vpop.f32.mrb[0].mxu0
    %1006 = vmatprep.mubr.f32.mxu0 0.0
    %1007 = vmatmul.mubr.f32.gmra.mrb[0].mxu0 %v927
    %v1008 = vpop.f32.mrb[0].mxu0
    %v1009 = vadd.f32 %v912, %v1008
    %v1010 = vpop.f32.mrb[0].mxu0
    %1011 = vmatprep.mubr.f32.mxu0 0.0
    %1012 = vmatmul.mubr.f32.gmra.mrb[0].mxu0 %v930
    %v1013 = vpop.f32.mrb[0].mxu0
    %v1014 = vadd.f32 %v917, %v1013
    %v1015 = vpop.f32.mrb[0].mxu0
    %1016 = vdwg.mxu0
    %v1017 = vld [vmem:[%s17] sm:$0x1]
    %v1019 = vlaneseq
    %v1020 = vshrl.u32 %v1019, 7
    %v1021 = vsub.s32 0, %v1020
    %v1022 = vrot.slane %v1017, %v1021
    %v1024 = vadd.f32 %v999, %v1022
    %v1025 = vadd.f32 %v1004, %v1022
    %v1026 = vadd.f32 %v1009, %v1022
    %v1027 = vadd.f32 %v1014, %v1022
    %1028 = vst.msk [vmem:[#allocation4] sm:$0xff] %vm372, %v1024
    %1029 = vst.msk [vmem:[#allocation4 + $0x8] sm:$0xff] %vm372, %v1025
    %1030 = vst.msk [vmem:[#allocation4 + $0x10] sm:$0xff] %vm372, %v1026
    %1031 = vst.msk [vmem:[#allocation4 + $0x18] sm:$0xff] %vm372, %v1027
    %1032 = vmatprep.subr.mxu0 0.0
    %1033 = vmatpush1.msra.mxu0 %v819
    %1034 = vmatprep.subr.mxu0 0.0
    %1035 = vmatpush1.msra.mxu0 %v820
    %1036 = vmatprep.subr.mxu0 0.0
    %1037 = vmatpush1.msra.mxu0 %v821
    %1038 = vmatprep.subr.mxu0 0.0
    %1039 = vmatpush1.msra.mxu0 %v822
    %1040 = vmatprep.subr.mxu0 0.0
    %1041 = vmatpush1.msra.mxu0 0.0
    %1042 = vmatprep.subr.mxu0 0.0
    %1043 = vmatpush1.msra.mxu0 0.0
    %1044 = vmatprep.subr.mxu0 0.0
    %1045 = vmatpush1.msra.mxu0 0.0
    %1046 = vmatprep.subr.mxu0 0.0
    %1047 = vmatpush1.msra.mxu0 0.0
    %1048 = vmatprep.subr.mxu0 0.0
    %1049 = vmatpush1.msra.mxu0 0.0
    %1050 = vmatprep.subr.mxu0 0.0
    %1051 = vmatpush1.msra.mxu0 0.0
    %1052 = vmatprep.subr.mxu0 0.0
    %1053 = vmatpush1.msra.mxu0 0.0
    %1054 = vmatprep.subr.mxu0 0.0
    %1055 = vmatpush1.msra.mxu0 0.0
    %1056 = vmatprep.subr.mxu0 0.0
    %1057 = vmatpush1.msra.mxu0 0.0
    %1058 = vmatprep.subr.mxu0 0.0
    %1059 = vmatpush1.msra.mxu0 0.0
    %1060 = vmatprep.subr.mxu0 0.0
    %1061 = vmatpush1.msra.mxu0 0.0
    %1062 = vmatprep.subr.mxu0 0.0
    %1063 = vmatpush1.msra.mxu0 0.0
    %1064 = vmatprep.subr.mxu0 0.0
    %1065 = vmatpush1.msra.mxu0 0.0
    %1066 = vmatprep.subr.mxu0 0.0
    %1067 = vmatpush1.msra.mxu0 0.0
    %1068 = vmatprep.subr.mxu0 0.0
    %1069 = vmatpush1.msra.mxu0 0.0
    %1070 = vmatprep.subr.mxu0 0.0
    %1071 = vmatpush1.msra.mxu0 0.0
    %1072 = vmatprep.subr.mxu0 0.0
    %1073 = vmatpush1.msra.mxu0 0.0
    %1074 = vmatprep.subr.mxu0 0.0
    %1075 = vmatpush1.msra.mxu0 0.0
    %1076 = vmatprep.subr.mxu0 0.0
    %1077 = vmatpush1.msra.mxu0 0.0
    %1078 = vmatprep.subr.mxu0 0.0
    %1079 = vmatpush1.msra.mxu0 0.0
    %1080 = vmatprep.subr.mxu0 0.0
    %1081 = vmatpush1.msra.mxu0 0.0
    %1082 = vmatprep.subr.mxu0 0.0
    %1083 = vmatpush1.msra.mxu0 0.0
    %1084 = vmatprep.subr.mxu0 0.0
    %1085 = vmatpush1.msra.mxu0 0.0
    %1086 = vmatprep.subr.mxu0 0.0
    %1087 = vmatpush1.msra.mxu0 0.0
    %1088 = vmatprep.subr.mxu0 0.0
    %1089 = vmatpush1.msra.mxu0 0.0
    %1090 = vmatprep.subr.mxu0 0.0
    %1091 = vmatpush1.msra.mxu0 0.0
    %1092 = vmatprep.subr.mxu0 0.0
    %1093 = vmatpush1.msra.mxu0 0.0
    %1094 = vmatprep.subr.mxu0 0.0
    %1095 = vmatpush1.msra.mxu0 0.0
    %1096 = vmatprep.mubr.f32.mxu0 0.0
    %1097 = vmatmul.mubr.f32.gmra.mrb[0].mxu0 %v824
    %v1098 = vpop.f32.mrb[0].mxu0
    %v1099 = vadd.f32 0.0, %v1098
    %v1100 = vpop.f32.mrb[0].mxu0
    %1101 = vmatprep.mubr.f32.mxu0 0.0
    %1102 = vmatmul.mubr.f32.gmra.mrb[0].mxu0 %v827
    %v1103 = vpop.f32.mrb[0].mxu0
    %v1104 = vadd.f32 0.0, %v1103
    %v1105 = vpop.f32.mrb[0].mxu0
    %1106 = vmatprep.mubr.f32.mxu0 0.0
    %1107 = vmatmul.mubr.f32.gmra.mrb[0].mxu0 %v830
    %v1108 = vpop.f32.mrb[0].mxu0
    %v1109 = vadd.f32 0.0, %v1108
    %v1110 = vpop.f32.mrb[0].mxu0
    %1111 = vmatprep.mubr.f32.mxu0 0.0
    %1112 = vmatmul.mubr.f32.gmra.mrb[0].mxu0 %v833
    %v1113 = vpop.f32.mrb[0].mxu0
    %v1114 = vadd.f32 0.0, %v1113
    %v1115 = vpop.f32.mrb[0].mxu0
    %1116 = vdwg.mxu0
    %1117 = vmatprep.subr.mxu0 0.0
    %1118 = vmatpush1.msra.mxu0 %v815
    %1119 = vmatprep.subr.mxu0 0.0
    %1120 = vmatpush1.msra.mxu0 %v816
    %1121 = vmatprep.subr.mxu0 0.0
    %1122 = vmatpush1.msra.mxu0 %v817
    %1123 = vmatprep.subr.mxu0 0.0
    %1124 = vmatpush1.msra.mxu0 %v818
    %1125 = vmatprep.subr.mxu0 0.0
    %1126 = vmatpush1.msra.mxu0 0.0
    %1127 = vmatprep.subr.mxu0 0.0
    %1128 = vmatpush1.msra.mxu0 0.0
    %1129 = vmatprep.subr.mxu0 0.0
    %1130 = vmatpush1.msra.mxu0 0.0
    %1131 = vmatprep.subr.mxu0 0.0
    %1132 = vmatpush1.msra.mxu0 0.0
    %1133 = vmatprep.subr.mxu0 0.0
    %1134 = vmatpush1.msra.mxu0 0.0
    %1135 = vmatprep.subr.mxu0 0.0
    %1136 = vmatpush1.msra.mxu0 0.0
    %1137 = vmatprep.subr.mxu0 0.0
    %1138 = vmatpush1.msra.mxu0 0.0
    %1139 = vmatprep.subr.mxu0 0.0
    %1140 = vmatpush1.msra.mxu0 0.0
    %1141 = vmatprep.subr.mxu0 0.0
    %1142 = vmatpush1.msra.mxu0 0.0
    %1143 = vmatprep.subr.mxu0 0.0
    %1144 = vmatpush1.msra.mxu0 0.0
    %1145 = vmatprep.subr.mxu0 0.0
    %1146 = vmatpush1.msra.mxu0 0.0
    %1147 = vmatprep.subr.mxu0 0.0
    %1148 = vmatpush1.msra.mxu0 0.0
    %1149 = vmatprep.subr.mxu0 0.0
    %1150 = vmatpush1.msra.mxu0 0.0
    %1151 = vmatprep.subr.mxu0 0.0
    %1152 = vmatpush1.msra.mxu0 0.0
    %1153 = vmatprep.subr.mxu0 0.0
    %1154 = vmatpush1.msra.mxu0 0.0
    %1155 = vmatprep.subr.mxu0 0.0
    %1156 = vmatpush1.msra.mxu0 0.0
    %1157 = vmatprep.subr.mxu0 0.0
    %1158 = vmatpush1.msra.mxu0 0.0
    %1159 = vmatprep.subr.mxu0 0.0
    %1160 = vmatpush1.msra.mxu0 0.0
    %1161 = vmatprep.subr.mxu0 0.0
    %1162 = vmatpush1.msra.mxu0 0.0
    %1163 = vmatprep.subr.mxu0 0.0
    %1164 = vmatpush1.msra.mxu0 0.0
    %1165 = vmatprep.subr.mxu0 0.0
    %1166 = vmatpush1.msra.mxu0 0.0
    %1167 = vmatprep.subr.mxu0 0.0
    %1168 = vmatpush1.msra.mxu0 0.0
    %1169 = vmatprep.subr.mxu0 0.0
    %1170 = vmatpush1.msra.mxu0 0.0
    %1171 = vmatprep.subr.mxu0 0.0
    %1172 = vmatpush1.msra.mxu0 0.0
    %1173 = vmatprep.subr.mxu0 0.0
    %1174 = vmatpush1.msra.mxu0 0.0
    %1175 = vmatprep.subr.mxu0 0.0
    %1176 = vmatpush1.msra.mxu0 0.0
    %1177 = vmatprep.subr.mxu0 0.0
    %1178 = vmatpush1.msra.mxu0 0.0
    %1179 = vmatprep.subr.mxu0 0.0
    %1180 = vmatpush1.msra.mxu0 0.0
    %1181 = vmatprep.mubr.f32.mxu0 0.0
    %1182 = vmatmul.mubr.f32.gmra.mrb[0].mxu0 %v921
    %v1183 = vpop.f32.mrb[0].mxu0
    %v1184 = vadd.f32 %v1099, %v1183
    %v1185 = vpop.f32.mrb[0].mxu0
    %1186 = vmatprep.mubr.f32.mxu0 0.0
    %1187 = vmatmul.mubr.f32.gmra.mrb[0].mxu0 %v924
    %v1188 = vpop.f32.mrb[0].mxu0
    %v1189 = vadd.f32 %v1104, %v1188
    %v1190 = vpop.f32.mrb[0].mxu0
    %1191 = vmatprep.mubr.f32.mxu0 0.0
    %1192 = vmatmul.mubr.f32.gmra.mrb[0].mxu0 %v927
    %v1193 = vpop.f32.mrb[0].mxu0
    %v1194 = vadd.f32 %v1109, %v1193
    %v1195 = vpop.f32.mrb[0].mxu0
    %1196 = vmatprep.mubr.f32.mxu0 0.0
    %1197 = vmatmul.mubr.f32.gmra.mrb[0].mxu0 %v930
    %v1198 = vpop.f32.mrb[0].mxu0
    %v1199 = vadd.f32 %v1114, %v1198
    %v1200 = vpop.f32.mrb[0].mxu0
    %1201 = vdwg.mxu0
    %v1202 = vld [vmem:[%s20] sm:$0x1]
    %v1204 = vlaneseq
    %v1205 = vshrl.u32 %v1204, 7
    %v1206 = vsub.s32 0, %v1205
    %v1207 = vrot.slane %v1202, %v1206
    %v1209 = vadd.f32 %v1184, %v1207
    %v1210 = vadd.f32 %v1189, %v1207
    %v1211 = vadd.f32 %v1194, %v1207
    %v1212 = vadd.f32 %v1199, %v1207
    %1213 = vst.msk [vmem:[#allocation5] sm:$0xff] %vm372, %v1209
    %1214 = vst.msk [vmem:[#allocation5 + $0x8] sm:$0xff] %vm372, %v1210
    %1215 = vst.msk [vmem:[#allocation5 + $0x10] sm:$0xff] %vm372, %v1211
    %1216 = vst.msk [vmem:[#allocation5 + $0x18] sm:$0xff] %vm372, %v1212
    %v1217 = vld [vmem:[%s16] sm:$0xff]
    %v1218 = vld [vmem:[%s16 + $0x8] sm:$0xff]
    %v1219 = vld [vmem:[%s19] sm:$0xff]
    %v1220 = vld [vmem:[%s19 + $0x8] sm:$0xff]
    %v1221 = vld [vmem:[#allocation4] sm:$0xff]
    %v1222 = vld [vmem:[#allocation4 + $0x8] sm:$0xff]
    %v1224 = vsel %vm94, 0.0, 0
    %1226 = vmatprep.subr.mxu0 0.0
    %1227 = vmatpush1.msra.mxu0 %v1217
    %1228 = vmatprep.subr.mxu0 0.0
    %1229 = vmatpush1.msra.mxu0 %v1218
    %1230 = vmatprep.subr.mxu0 0.0
    %1231 = vmatpush1.msra.mxu0 0.0
    %1232 = vmatprep.subr.mxu0 0.0
    %1233 = vmatpush1.msra.mxu0 0.0
    %1234 = vmatprep.subr.mxu0 0.0
    %1235 = vmatpush1.msra.mxu0 0.0
    %1236 = vmatprep.subr.mxu0 0.0
    %1237 = vmatpush1.msra.mxu0 0.0
    %1238 = vmatprep.subr.mxu0 0.0
    %1239 = vmatpush1.msra.mxu0 0.0
    %1240 = vmatprep.subr.mxu0 0.0
    %1241 = vmatpush1.msra.mxu0 0.0
    %1242 = vmatprep.subr.mxu0 0.0
    %1243 = vmatpush1.msra.mxu0 0.0
    %1244 = vmatprep.subr.mxu0 0.0
    %1245 = vmatpush1.msra.mxu0 0.0
    %1246 = vmatprep.subr.mxu0 0.0
    %1247 = vmatpush1.msra.mxu0 0.0
    %1248 = vmatprep.subr.mxu0 0.0
    %1249 = vmatpush1.msra.mxu0 0.0
    %1250 = vmatprep.subr.mxu0 0.0
    %1251 = vmatpush1.msra.mxu0 0.0
    %1252 = vmatprep.subr.mxu0 0.0
    %1253 = vmatpush1.msra.mxu0 0.0
    %1254 = vmatprep.subr.mxu0 0.0
    %1255 = vmatpush1.msra.mxu0 0.0
    %1256 = vmatprep.subr.mxu0 0.0
    %1257 = vmatpush1.msra.mxu0 0.0
    %1258 = vmatprep.subr.mxu0 0.0
    %1259 = vmatpush1.msra.mxu0 0.0
    %1260 = vmatprep.subr.mxu0 0.0
    %1261 = vmatpush1.msra.mxu0 0.0
    %1262 = vmatprep.subr.mxu0 0.0
    %1263 = vmatpush1.msra.mxu0 0.0
    %1264 = vmatprep.subr.mxu0 0.0
    %1265 = vmatpush1.msra.mxu0 0.0
    %1266 = vmatprep.subr.mxu0 0.0
    %1267 = vmatpush1.msra.mxu0 0.0
    %1268 = vmatprep.subr.mxu0 0.0
    %1269 = vmatpush1.msra.mxu0 0.0
    %1270 = vmatprep.subr.mxu0 0.0
    %1271 = vmatpush1.msra.mxu0 0.0
    %1272 = vmatprep.subr.mxu0 0.0
    %1273 = vmatpush1.msra.mxu0 0.0
    %1274 = vmatprep.subr.mxu0 0.0
    %1275 = vmatpush1.msra.mxu0 0.0
    %1276 = vmatprep.subr.mxu0 0.0
    %1277 = vmatpush1.msra.mxu0 0.0
    %1278 = vmatprep.subr.mxu0 0.0
    %1279 = vmatpush1.msra.mxu0 0.0
    %1280 = vmatprep.subr.mxu0 0.0
    %1281 = vmatpush1.msra.mxu0 0.0
    %1282 = vmatprep.subr.mxu0 0.0
    %1283 = vmatpush1.msra.mxu0 0.0
    %1284 = vmatprep.subr.mxu0 0.0
    %1285 = vmatpush1.msra.mxu0 0.0
    %1286 = vmatprep.subr.mxu0 0.0
    %1287 = vmatpush1.msra.mxu0 0.0
    %1288 = vmatprep.subr.mxu0 0.0
    %1289 = vmatpush1.msra.mxu0 0.0
    %1290 = vmatprep.mubr.f32.mxu0 0.0
    %1291 = vmatmul.mubr.f32.gmra.mrb[0].mxu0 %v1224
    %v1292 = vpop.f32.mrb[0].mxu0
    %v1293 = vadd.f32 0.0, %v1292
    %v1294 = vpop.f32.mrb[0].mxu0
    %1295 = vmatprep.mubr.f32.mxu0 0.0
    %1296 = vmatmul.mubr.f32.gmra.mrb[0].mxu0 %v1224
    %v1297 = vpop.f32.mrb[0].mxu0
    %v1298 = vadd.f32 0.0, %v1297
    %v1299 = vpop.f32.mrb[0].mxu0
    %1300 = vdwg.mxu0
    %v1301 = vadd.f32 %v1221, %v1293
    %v1302 = vadd.f32 %v1222, %v1298
    %v1303 = vxor.u32 %v1301, 2147483648
    %v1304 = vxor.u32 %v1302, 2147483648
    %v1305 = vmul.f32 %v1303, 1.442695
    %v1306 = vpow.pop %v1305
    %v1307 = vmul.f32 %v1304, 1.442695
    %v1308 = vpow.pop %v1307
    %v1309 = vadd.f32 %v1306, 1.0
    %v1310 = vadd.f32 %v1308, 1.0
    %v1311 = vrcp.pop %v1309
    %v1312 = vmul.f32 1.0, %v1311
    %v1313 = vrcp.pop %v1310
    %v1314 = vmul.f32 1.0, %v1313
    %v1315 = vtanh.pop %v1301
    %v1316 = vtanh.pop %v1302
    %v1317 = vmul.f32 %v1312, 0.0
    %v1318 = vmul.f32 %v1314, 0.0
    %1321 = vrot.lane.b32.xlu0 %v1315, 80
    %v1322 = vpop.permute.xlu0 %1321
    %1323 = vrot.lane.b32.xlu0 %v1316, 80
    %v1324 = vpop.permute.xlu0 %1323
    %v1327 = vmul.f32 %v1312, %v1322
    %v1328 = vmul.f32 %v1314, %v1324
    %1331 = vrot.lane.b32.xlu0 %v1327, 16
    %v1332 = vpop.permute.xlu0 %1331
    %1333 = vrot.lane.b32.xlu0 %v1328, 16
    %v1334 = vpop.permute.xlu0 %1333
    %v1337 = vadd.f32 %v1317, %v1332
    %v1338 = vadd.f32 %v1318, %v1334
    %v1339 = vtanh.pop %v1337
    %v1340 = vtanh.pop %v1338
    %1343 = vrot.lane.b32.xlu0 %v1339, 16
    %v1344 = vpop.permute.xlu0 %1343
    %1345 = vrot.lane.b32.xlu0 %v1340, 16
    %v1346 = vpop.permute.xlu0 %1345
    %v1349 = vmul.f32 %v1312, %v1344
    %v1350 = vmul.f32 %v1314, %v1346
    %s1351 = scalar_lea.vmem [#allocation5], 16
    %v1352 = vld [vmem:[%s1351] sm:$0xff]
    %v1353 = vld [vmem:[%s1351 + $0x8] sm:$0xff]
    %1354 = vmatprep.subr.mxu0 0.0
    %1355 = vmatpush1.msra.mxu0 %v1219
    %1356 = vmatprep.subr.mxu0 0.0
    %1357 = vmatpush1.msra.mxu0 %v1220
    %1358 = vmatprep.subr.mxu0 0.0
    %1359 = vmatpush1.msra.mxu0 0.0
    %1360 = vmatprep.subr.mxu0 0.0
    %1361 = vmatpush1.msra.mxu0 0.0
    %1362 = vmatprep.subr.mxu0 0.0
    %1363 = vmatpush1.msra.mxu0 0.0
    %1364 = vmatprep.subr.mxu0 0.0
    %1365 = vmatpush1.msra.mxu0 0.0
    %1366 = vmatprep.subr.mxu0 0.0
    %1367 = vmatpush1.msra.mxu0 0.0
    %1368 = vmatprep.subr.mxu0 0.0
    %1369 = vmatpush1.msra.mxu0 0.0
    %1370 = vmatprep.subr.mxu0 0.0
    %1371 = vmatpush1.msra.mxu0 0.0
    %1372 = vmatprep.subr.mxu0 0.0
    %1373 = vmatpush1.msra.mxu0 0.0
    %1374 = vmatprep.subr.mxu0 0.0
    %1375 = vmatpush1.msra.mxu0 0.0
    %1376 = vmatprep.subr.mxu0 0.0
    %1377 = vmatpush1.msra.mxu0 0.0
    %1378 = vmatprep.subr.mxu0 0.0
    %1379 = vmatpush1.msra.mxu0 0.0
    %1380 = vmatprep.subr.mxu0 0.0
    %1381 = vmatpush1.msra.mxu0 0.0
    %1382 = vmatprep.subr.mxu0 0.0
    %1383 = vmatpush1.msra.mxu0 0.0
    %1384 = vmatprep.subr.mxu0 0.0
    %1385 = vmatpush1.msra.mxu0 0.0
    %1386 = vmatprep.subr.mxu0 0.0
    %1387 = vmatpush1.msra.mxu0 0.0
    %1388 = vmatprep.subr.mxu0 0.0
    %1389 = vmatpush1.msra.mxu0 0.0
    %1390 = vmatprep.subr.mxu0 0.0
    %1391 = vmatpush1.msra.mxu0 0.0
    %1392 = vmatprep.subr.mxu0 0.0
    %1393 = vmatpush1.msra.mxu0 0.0
    %1394 = vmatprep.subr.mxu0 0.0
    %1395 = vmatpush1.msra.mxu0 0.0
    %1396 = vmatprep.subr.mxu0 0.0
    %1397 = vmatpush1.msra.mxu0 0.0
    %1398 = vmatprep.subr.mxu0 0.0
    %1399 = vmatpush1.msra.mxu0 0.0
    %1400 = vmatprep.subr.mxu0 0.0
    %1401 = vmatpush1.msra.mxu0 0.0
    %1402 = vmatprep.subr.mxu0 0.0
    %1403 = vmatpush1.msra.mxu0 0.0
    %1404 = vmatprep.subr.mxu0 0.0
    %1405 = vmatpush1.msra.mxu0 0.0
    %1406 = vmatprep.subr.mxu0 0.0
    %1407 = vmatpush1.msra.mxu0 0.0
    %1408 = vmatprep.subr.mxu0 0.0
    %1409 = vmatpush1.msra.mxu0 0.0
    %1410 = vmatprep.subr.mxu0 0.0
    %1411 = vmatpush1.msra.mxu0 0.0
    %1412 = vmatprep.subr.mxu0 0.0
    %1413 = vmatpush1.msra.mxu0 0.0
    %1414 = vmatprep.subr.mxu0 0.0
    %1415 = vmatpush1.msra.mxu0 0.0
    %1416 = vmatprep.subr.mxu0 0.0
    %1417 = vmatpush1.msra.mxu0 0.0
    %1418 = vmatprep.mubr.f32.mxu0 0.0
    %1419 = vmatmul.mubr.f32.gmra.mrb[0].mxu0 %v1224
    %v1420 = vpop.f32.mrb[0].mxu0
    %v1421 = vadd.f32 0.0, %v1420
    %v1422 = vpop.f32.mrb[0].mxu0
    %1423 = vmatprep.mubr.f32.mxu0 0.0
    %1424 = vmatmul.mubr.f32.gmra.mrb[0].mxu0 %v1224
    %v1425 = vpop.f32.mrb[0].mxu0
    %v1426 = vadd.f32 0.0, %v1425
    %v1427 = vpop.f32.mrb[0].mxu0
    %1428 = vdwg.mxu0
    %v1429 = vadd.f32 %v1352, %v1421
    %v1430 = vadd.f32 %v1353, %v1426
    %v1431 = vxor.u32 %v1429, 2147483648
    %v1432 = vxor.u32 %v1430, 2147483648
    %v1433 = vmul.f32 %v1431, 1.442695
    %v1434 = vpow.pop %v1433
    %v1435 = vmul.f32 %v1432, 1.442695
    %v1436 = vpow.pop %v1435
    %v1437 = vadd.f32 %v1434, 1.0
    %v1438 = vadd.f32 %v1436, 1.0
    %v1439 = vrcp.pop %v1437
    %v1440 = vmul.f32 1.0, %v1439
    %v1441 = vrcp.pop %v1438
    %v1442 = vmul.f32 1.0, %v1441
    %v1443 = vtanh.pop %v1429
    %v1444 = vtanh.pop %v1430
    %v1445 = vmul.f32 %v1440, 0.0
    %v1446 = vmul.f32 %v1442, 0.0
    %1449 = vrot.lane.b32.xlu0 %v1443, 80
    %v1450 = vpop.permute.xlu0 %1449
    %1451 = vrot.lane.b32.xlu0 %v1444, 80
    %v1452 = vpop.permute.xlu0 %1451
    %v1455 = vmul.f32 %v1440, %v1450
    %v1456 = vmul.f32 %v1442, %v1452
    %1459 = vrot.lane.b32.xlu0 %v1455, 16
    %v1460 = vpop.permute.xlu0 %1459
    %1461 = vrot.lane.b32.xlu0 %v1456, 16
    %v1462 = vpop.permute.xlu0 %1461
    %v1465 = vadd.f32 %v1445, %v1460
    %v1466 = vadd.f32 %v1446, %v1462
    %v1467 = vtanh.pop %v1465
    %v1468 = vtanh.pop %v1466
    %1471 = vrot.lane.b32.xlu0 %v1467, 16
    %v1472 = vpop.permute.xlu0 %1471
    %1473 = vrot.lane.b32.xlu0 %v1468, 16
    %v1474 = vpop.permute.xlu0 %1473
    %v1477 = vmul.f32 %v1440, %v1472
    %v1478 = vmul.f32 %v1442, %v1474
    %1480 = vrot.lane.b32.xlu0 %v1349, 96
    %v1481 = vpop.permute.xlu0 %1480
    %1483 = vst.msk [vmem:[#allocation3] sm:$0xff] %vm94, %v1481
    %1485 = vrot.lane.b32.xlu0 %v1350, 96
    %v1486 = vpop.permute.xlu0 %1485
    %1488 = vst.msk [vmem:[#allocation2] sm:$0xff] %vm94, %v1486
    %1490 = vrot.lane.b32.xlu0 %v1477, 112
    %v1491 = vpop.permute.xlu0 %1490
    %s1493 = scalar_lea.vmem [#allocation3], 8
    %vm1494 = vcmask 261248
    %1495 = vst.msk [vmem:[%s1493] sm:$0xff] %vm1494, %v1491
    %1497 = vrot.lane.b32.xlu0 %v1478, 112
    %v1498 = vpop.permute.xlu0 %1497
    %s1500 = scalar_lea.vmem [#allocation2], 8
    %1501 = vst.msk [vmem:[%s1500] sm:$0xff] %vm1494, %v1498
    %s1502 = scalar_lea.vmem [#allocation4], 16
    %v1503 = vld [vmem:[%s1502] sm:$0xff]
    %v1504 = vld [vmem:[%s1502 + $0x8] sm:$0xff]
    %v1505 = vsel %vm94, %v1481, 0
    %v1507 = vsel %vm94, %v1486, 0
    %1509 = vmatprep.subr.mxu0 0.0
    %1510 = vmatpush1.msra.mxu0 %v1217
    %1511 = vmatprep.subr.mxu0 0.0
    %1512 = vmatpush1.msra.mxu0 %v1218
    %1513 = vmatprep.subr.mxu0 0.0
    %1514 = vmatpush1.msra.mxu0 0.0
    %1515 = vmatprep.subr.mxu0 0.0
    %1516 = vmatpush1.msra.mxu0 0.0
    %1517 = vmatprep.subr.mxu0 0.0
    %1518 = vmatpush1.msra.mxu0 0.0
    %1519 = vmatprep.subr.mxu0 0.0
    %1520 = vmatpush1.msra.mxu0 0.0
    %1521 = vmatprep.subr.mxu0 0.0
    %1522 = vmatpush1.msra.mxu0 0.0
    %1523 = vmatprep.subr.mxu0 0.0
    %1524 = vmatpush1.msra.mxu0 0.0
    %1525 = vmatprep.subr.mxu0 0.0
    %1526 = vmatpush1.msra.mxu0 0.0
    %1527 = vmatprep.subr.mxu0 0.0
    %1528 = vmatpush1.msra.mxu0 0.0
    %1529 = vmatprep.subr.mxu0 0.0
    %1530 = vmatpush1.msra.mxu0 0.0
    %1531 = vmatprep.subr.mxu0 0.0
    %1532 = vmatpush1.msra.mxu0 0.0
    %1533 = vmatprep.subr.mxu0 0.0
    %1534 = vmatpush1.msra.mxu0 0.0
    %1535 = vmatprep.subr.mxu0 0.0
    %1536 = vmatpush1.msra.mxu0 0.0
    %1537 = vmatprep.subr.mxu0 0.0
    %1538 = vmatpush1.msra.mxu0 0.0
    %1539 = vmatprep.subr.mxu0 0.0
    %1540 = vmatpush1.msra.mxu0 0.0
    %1541 = vmatprep.subr.mxu0 0.0
    %1542 = vmatpush1.msra.mxu0 0.0
    %1543 = vmatprep.subr.mxu0 0.0
    %1544 = vmatpush1.msra.mxu0 0.0
    %1545 = vmatprep.subr.mxu0 0.0
    %1546 = vmatpush1.msra.mxu0 0.0
    %1547 = vmatprep.subr.mxu0 0.0
    %1548 = vmatpush1.msra.mxu0 0.0
    %1549 = vmatprep.subr.mxu0 0.0
    %1550 = vmatpush1.msra.mxu0 0.0
    %1551 = vmatprep.subr.mxu0 0.0
    %1552 = vmatpush1.msra.mxu0 0.0
    %1553 = vmatprep.subr.mxu0 0.0
    %1554 = vmatpush1.msra.mxu0 0.0
    %1555 = vmatprep.subr.mxu0 0.0
    %1556 = vmatpush1.msra.mxu0 0.0
    %1557 = vmatprep.subr.mxu0 0.0
    %1558 = vmatpush1.msra.mxu0 0.0
    %1559 = vmatprep.subr.mxu0 0.0
    %1560 = vmatpush1.msra.mxu0 0.0
    %1561 = vmatprep.subr.mxu0 0.0
    %1562 = vmatpush1.msra.mxu0 0.0
    %1563 = vmatprep.subr.mxu0 0.0
    %1564 = vmatpush1.msra.mxu0 0.0
    %1565 = vmatprep.subr.mxu0 0.0
    %1566 = vmatpush1.msra.mxu0 0.0
    %1567 = vmatprep.subr.mxu0 0.0
    %1568 = vmatpush1.msra.mxu0 0.0
    %1569 = vmatprep.subr.mxu0 0.0
    %1570 = vmatpush1.msra.mxu0 0.0
    %1571 = vmatprep.subr.mxu0 0.0
    %1572 = vmatpush1.msra.mxu0 0.0
    %1573 = vmatprep.mubr.f32.mxu0 0.0
    %1574 = vmatmul.mubr.f32.gmra.mrb[0].mxu0 %v1505
    %v1575 = vpop.f32.mrb[0].mxu0
    %v1576 = vadd.f32 0.0, %v1575
    %v1577 = vpop.f32.mrb[0].mxu0
    %1578 = vmatprep.mubr.f32.mxu0 0.0
    %1579 = vmatmul.mubr.f32.gmra.mrb[0].mxu0 %v1507
    %v1580 = vpop.f32.mrb[0].mxu0
    %v1581 = vadd.f32 0.0, %v1580
    %v1582 = vpop.f32.mrb[0].mxu0
    %1583 = vdwg.mxu0
    %v1584 = vadd.f32 %v1503, %v1576
    %v1585 = vadd.f32 %v1504, %v1581
    %v1586 = vxor.u32 %v1584, 2147483648
    %v1587 = vxor.u32 %v1585, 2147483648
    %v1588 = vmul.f32 %v1586, 1.442695
    %v1589 = vpow.pop %v1588
    %v1590 = vmul.f32 %v1587, 1.442695
    %v1591 = vpow.pop %v1590
    %v1592 = vadd.f32 %v1589, 1.0
    %v1593 = vadd.f32 %v1591, 1.0
    %v1594 = vrcp.pop %v1592
    %v1595 = vmul.f32 1.0, %v1594
    %v1596 = vrcp.pop %v1593
    %v1597 = vmul.f32 1.0, %v1596
    %v1598 = vtanh.pop %v1584
    %v1599 = vtanh.pop %v1585
    %v1600 = vmul.f32 %v1595, %v1337
    %v1601 = vmul.f32 %v1597, %v1338
    %1604 = vrot.lane.b32.xlu0 %v1598, 80
    %v1605 = vpop.permute.xlu0 %1604
    %1606 = vrot.lane.b32.xlu0 %v1599, 80
    %v1607 = vpop.permute.xlu0 %1606
    %v1610 = vmul.f32 %v1595, %v1605
    %v1611 = vmul.f32 %v1597, %v1607
    %1614 = vrot.lane.b32.xlu0 %v1610, 16
    %v1615 = vpop.permute.xlu0 %1614
    %1616 = vrot.lane.b32.xlu0 %v1611, 16
    %v1617 = vpop.permute.xlu0 %1616
    %v1620 = vadd.f32 %v1600, %v1615
    %v1621 = vadd.f32 %v1601, %v1617
    %v1622 = vtanh.pop %v1620
    %v1623 = vtanh.pop %v1621
    %1626 = vrot.lane.b32.xlu0 %v1622, 16
    %v1627 = vpop.permute.xlu0 %1626
    %1628 = vrot.lane.b32.xlu0 %v1623, 16
    %v1629 = vpop.permute.xlu0 %1628
    %v1632 = vmul.f32 %v1595, %v1627
    %v1633 = vmul.f32 %v1597, %v1629
    %v1634 = vld [vmem:[#allocation5] sm:$0xff]
    %v1635 = vld [vmem:[#allocation5 + $0x8] sm:$0xff]
    %1636 = vrot.lane.b32.xlu0 %v1477, 96
    %v1637 = vpop.permute.xlu0 %1636
    %1638 = vrot.lane.b32.xlu0 %v1478, 96
    %v1639 = vpop.permute.xlu0 %1638
    %v1640 = vsel %vm94, %v1637, 0
    %v1642 = vsel %vm94, %v1639, 0
    %1644 = vmatprep.subr.mxu0 0.0
    %1645 = vmatpush1.msra.mxu0 %v1219
    %1646 = vmatprep.subr.mxu0 0.0
    %1647 = vmatpush1.msra.mxu0 %v1220
    %1648 = vmatprep.subr.mxu0 0.0
    %1649 = vmatpush1.msra.mxu0 0.0
    %1650 = vmatprep.subr.mxu0 0.0
    %1651 = vmatpush1.msra.mxu0 0.0
    %1652 = vmatprep.subr.mxu0 0.0
    %1653 = vmatpush1.msra.mxu0 0.0
    %1654 = vmatprep.subr.mxu0 0.0
    %1655 = vmatpush1.msra.mxu0 0.0
    %1656 = vmatprep.subr.mxu0 0.0
    %1657 = vmatpush1.msra.mxu0 0.0
    %1658 = vmatprep.subr.mxu0 0.0
    %1659 = vmatpush1.msra.mxu0 0.0
    %1660 = vmatprep.subr.mxu0 0.0
    %1661 = vmatpush1.msra.mxu0 0.0
    %1662 = vmatprep.subr.mxu0 0.0
    %1663 = vmatpush1.msra.mxu0 0.0
    %1664 = vmatprep.subr.mxu0 0.0
    %1665 = vmatpush1.msra.mxu0 0.0
    %1666 = vmatprep.subr.mxu0 0.0
    %1667 = vmatpush1.msra.mxu0 0.0
    %1668 = vmatprep.subr.mxu0 0.0
    %1669 = vmatpush1.msra.mxu0 0.0
    %1670 = vmatprep.subr.mxu0 0.0
    %1671 = vmatpush1.msra.mxu0 0.0
    %1672 = vmatprep.subr.mxu0 0.0
    %1673 = vmatpush1.msra.mxu0 0.0
    %1674 = vmatprep.subr.mxu0 0.0
    %1675 = vmatpush1.msra.mxu0 0.0
    %1676 = vmatprep.subr.mxu0 0.0
    %1677 = vmatpush1.msra.mxu0 0.0
    %1678 = vmatprep.subr.mxu0 0.0
    %1679 = vmatpush1.msra.mxu0 0.0
    %1680 = vmatprep.subr.mxu0 0.0
    %1681 = vmatpush1.msra.mxu0 0.0
    %1682 = vmatprep.subr.mxu0 0.0
    %1683 = vmatpush1.msra.mxu0 0.0
    %1684 = vmatprep.subr.mxu0 0.0
    %1685 = vmatpush1.msra.mxu0 0.0
    %1686 = vmatprep.subr.mxu0 0.0
    %1687 = vmatpush1.msra.mxu0 0.0
    %1688 = vmatprep.subr.mxu0 0.0
    %1689 = vmatpush1.msra.mxu0 0.0
    %1690 = vmatprep.subr.mxu0 0.0
    %1691 = vmatpush1.msra.mxu0 0.0
    %1692 = vmatprep.subr.mxu0 0.0
    %1693 = vmatpush1.msra.mxu0 0.0
    %1694 = vmatprep.subr.mxu0 0.0
    %1695 = vmatpush1.msra.mxu0 0.0
    %1696 = vmatprep.subr.mxu0 0.0
    %1697 = vmatpush1.msra.mxu0 0.0
    %1698 = vmatprep.subr.mxu0 0.0
    %1699 = vmatpush1.msra.mxu0 0.0
    %1700 = vmatprep.subr.mxu0 0.0
    %1701 = vmatpush1.msra.mxu0 0.0
    %1702 = vmatprep.subr.mxu0 0.0
    %1703 = vmatpush1.msra.mxu0 0.0
    %1704 = vmatprep.subr.mxu0 0.0
    %1705 = vmatpush1.msra.mxu0 0.0
    %1706 = vmatprep.subr.mxu0 0.0
    %1707 = vmatpush1.msra.mxu0 0.0
    %1708 = vmatprep.mubr.f32.mxu0 0.0
    %1709 = vmatmul.mubr.f32.gmra.mrb[0].mxu0 %v1640
    %v1710 = vpop.f32.mrb[0].mxu0
    %v1711 = vadd.f32 0.0, %v1710
    %v1712 = vpop.f32.mrb[0].mxu0
    %1713 = vmatprep.mubr.f32.mxu0 0.0
    %1714 = vmatmul.mubr.f32.gmra.mrb[0].mxu0 %v1642
    %v1715 = vpop.f32.mrb[0].mxu0
    %v1716 = vadd.f32 0.0, %v1715
    %v1717 = vpop.f32.mrb[0].mxu0
    %1718 = vdwg.mxu0
    %v1719 = vadd.f32 %v1634, %v1711
    %v1720 = vadd.f32 %v1635, %v1716
    %v1721 = vxor.u32 %v1719, 2147483648
    %v1722 = vxor.u32 %v1720, 2147483648
    %v1723 = vmul.f32 %v1721, 1.442695
    %v1724 = vpow.pop %v1723
    %v1725 = vmul.f32 %v1722, 1.442695
    %v1726 = vpow.pop %v1725
    %v1727 = vadd.f32 %v1724, 1.0
    %v1728 = vadd.f32 %v1726, 1.0
    %v1729 = vrcp.pop %v1727
    %v1730 = vmul.f32 1.0, %v1729
    %v1731 = vrcp.pop %v1728
    %v1732 = vmul.f32 1.0, %v1731
    %v1733 = vtanh.pop %v1719
    %v1734 = vtanh.pop %v1720
    %v1735 = vmul.f32 %v1730, %v1465
    %v1736 = vmul.f32 %v1732, %v1466
    %1739 = vrot.lane.b32.xlu0 %v1733, 80
    %v1740 = vpop.permute.xlu0 %1739
    %1741 = vrot.lane.b32.xlu0 %v1734, 80
    %v1742 = vpop.permute.xlu0 %1741
    %v1745 = vmul.f32 %v1730, %v1740
    %v1746 = vmul.f32 %v1732, %v1742
    %1749 = vrot.lane.b32.xlu0 %v1745, 16
    %v1750 = vpop.permute.xlu0 %1749
    %1751 = vrot.lane.b32.xlu0 %v1746, 16
    %v1752 = vpop.permute.xlu0 %1751
    %v1755 = vadd.f32 %v1735, %v1750
    %v1756 = vadd.f32 %v1736, %v1752
    %v1757 = vtanh.pop %v1755
    %v1758 = vtanh.pop %v1756
    %1761 = vrot.lane.b32.xlu0 %v1757, 16
    %v1762 = vpop.permute.xlu0 %1761
    %1763 = vrot.lane.b32.xlu0 %v1758, 16
    %v1764 = vpop.permute.xlu0 %1763
    %v1767 = vmul.f32 %v1730, %v1762
    %v1768 = vmul.f32 %v1732, %v1764
    %1770 = vrot.lane.b32.xlu0 %v1632, 96
    %v1771 = vpop.permute.xlu0 %1770
    %1773 = vst.msk [vmem:[%s1493] sm:$0xff] %vm94, %v1771
    %1775 = vrot.lane.b32.xlu0 %v1633, 96
    %v1776 = vpop.permute.xlu0 %1775
    %1778 = vst.msk [vmem:[%s1500] sm:$0xff] %vm94, %v1776
    %1780 = vrot.lane.b32.xlu0 %v1767, 112
    %v1781 = vpop.permute.xlu0 %1780
    %1783 = vst.msk [vmem:[#allocation3] sm:$0xff] %vm1494, %v1781
    %1785 = vrot.lane.b32.xlu0 %v1768, 112
    %v1786 = vpop.permute.xlu0 %1785
    %1788 = vst.msk [vmem:[#allocation2] sm:$0xff] %vm1494, %v1786
    %v1789 = vld [vmem:[#allocation2] sm:$0xff]
    %v1790 = vld [vmem:[#allocation2 + $0x8] sm:$0xff]
    %v1791 = vld [vmem:[#allocation3] sm:$0xff]
    %v1792 = vld [vmem:[#allocation3 + $0x8] sm:$0xff]
    %v1793 = vsel %vm222, %v1789, 0.0
    %v1794 = vrot.slane %v1793, 4
    %v1795 = vadd.f32 %v1793, %v1794
    %v1796 = vrot.slane %v1795, 2
    %v1797 = vadd.f32 %v1795, %v1796
    %v1798 = vrot.slane %v1797, 1
    %v1799 = vadd.f32 %v1797, %v1798
    %v1800 = vsel %vm222, %v1790, 0.0
    %v1801 = vrot.slane %v1800, 4
    %v1802 = vadd.f32 %v1800, %v1801
    %v1803 = vrot.slane %v1802, 2
    %v1804 = vadd.f32 %v1802, %v1803
    %v1805 = vrot.slane %v1804, 1
    %v1806 = vadd.f32 %v1804, %v1805
    %v1807 = vrcp.pop 8.0
    %v1808 = vmul.f32 %v1799, %v1807
    %v1809 = vmul.f32 %v1806, %v1807
    %v1810 = vsel %vm222, %v1789, -inf
    %v1811 = vrot.slane %v1810, 4
    %v1812 = vmax.f32 %v1810, %v1811
    %v1813 = vrot.slane %v1812, 2
    %v1814 = vmax.f32 %v1812, %v1813
    %v1815 = vrot.slane %v1814, 1
    %v1816 = vmax.f32 %v1814, %v1815
    %v1817 = vsel %vm222, %v1790, -inf
    %v1818 = vrot.slane %v1817, 4
    %v1819 = vmax.f32 %v1817, %v1818
    %v1820 = vrot.slane %v1819, 2
    %v1821 = vmax.f32 %v1819, %v1820
    %v1822 = vrot.slane %v1821, 1
    %v1823 = vmax.f32 %v1821, %v1822
    %vm1826 = vcmask 1041409
    %v1827 = vsel %vm1826, %v1809, %v1808
    %v1831 = vsel %vm1826, %v1823, %v1816
    %1832 = vrot.lane.b32.xlu0 %v1831, 32
    %v1833 = vpop.permute.xlu0 %1832
    %v1835 = vsel %vm222, %v1827, %v1833
    %v1836 = vsel %vm222, %v1791, 0.0
    %v1837 = vrot.slane %v1836, 4
    %v1838 = vadd.f32 %v1836, %v1837
    %v1839 = vrot.slane %v1838, 2
    %v1840 = vadd.f32 %v1838, %v1839
    %v1841 = vrot.slane %v1840, 1
    %v1842 = vadd.f32 %v1840, %v1841
    %v1843 = vsel %vm222, %v1792, 0.0
    %v1844 = vrot.slane %v1843, 4
    %v1845 = vadd.f32 %v1843, %v1844
    %v1846 = vrot.slane %v1845, 2
    %v1847 = vadd.f32 %v1845, %v1846
    %v1848 = vrot.slane %v1847, 1
    %v1849 = vadd.f32 %v1847, %v1848
    %v1850 = vmul.f32 %v1842, %v1807
    %v1851 = vmul.f32 %v1849, %v1807
    %v1852 = vsel %vm222, %v1791, -inf
    %v1853 = vrot.slane %v1852, 4
    %v1854 = vmax.f32 %v1852, %v1853
    %v1855 = vrot.slane %v1854, 2
    %v1856 = vmax.f32 %v1854, %v1855
    %v1857 = vrot.slane %v1856, 1
    %v1858 = vmax.f32 %v1856, %v1857
    %v1859 = vsel %vm222, %v1792, -inf
    %v1860 = vrot.slane %v1859, 4
    %v1861 = vmax.f32 %v1859, %v1860
    %v1862 = vrot.slane %v1861, 2
    %v1863 = vmax.f32 %v1861, %v1862
    %v1864 = vrot.slane %v1863, 1
    %v1865 = vmax.f32 %v1863, %v1864
    %v1868 = vsel %vm1826, %v1851, %v1850
    %v1872 = vsel %vm1826, %v1865, %v1858
    %1873 = vrot.lane.b32.xlu0 %v1872, 32
    %v1874 = vpop.permute.xlu0 %1873
    %v1876 = vsel %vm222, %v1868, %v1874
    %v1877 = vsub.f32 %v1835, %v1876
    %v1878 = vmul.f32 %v1835, %v1876
    %1880 = vrot.lane.b32.xlu0 %v1876, 64
    %v1881 = vpop.permute.xlu0 %1880
    %1884 = vrot.lane.b32.xlu0 %v1878, 64
    %v1885 = vpop.permute.xlu0 %1884
    %v1887 = vsel %vm372, %v1835, %v1881
    %v1888 = vsel %vm372, %v1877, %v1885
    %v1889 = vld [vmem:[%s21] sm:$0xff]
    %v1890 = vld [vmem:[%s21 + $0x8] sm:$0xff]
    %v1891 = vld [vmem:[%s21 + $0x10] sm:$0xff]
    %v1892 = vld [vmem:[%s21 + $0x18] sm:$0xff]
    %v1893 = vld [vmem:[%s21 + $0x20] sm:$0xff]
    %v1894 = vld [vmem:[%s21 + $0x28] sm:$0xff]
    %v1895 = vld [vmem:[%s21 + $0x30] sm:$0xff]
    %v1896 = vld [vmem:[%s21 + $0x38] sm:$0xff]
    %v1897 = vld [vmem:[%s21 + $0x40] sm:$0xff]
    %v1898 = vld [vmem:[%s21 + $0x48] sm:$0xff]
    %v1899 = vld [vmem:[%s21 + $0x50] sm:$0xff]
    %v1900 = vld [vmem:[%s21 + $0x58] sm:$0xff]
    %v1901 = vld [vmem:[%s21 + $0x60] sm:$0xff]
    %v1902 = vld [vmem:[%s21 + $0x68] sm:$0xff]
    %v1903 = vld [vmem:[%s21 + $0x70] sm:$0xff]
    %v1904 = vld [vmem:[%s21 + $0x78] sm:$0xff]
    %v1905 = vld [vmem:[%s21 + $0x80] sm:$0xff]
    %v1906 = vld [vmem:[%s21 + $0x88] sm:$0xff]
    %v1907 = vld [vmem:[%s21 + $0x90] sm:$0xff]
    %v1908 = vld [vmem:[%s21 + $0x98] sm:$0xff]
    %v1909 = vld [vmem:[%s21 + $0xa0] sm:$0xff]
    %v1910 = vld [vmem:[%s21 + $0xa8] sm:$0xff]
    %v1911 = vld [vmem:[%s21 + $0xb0] sm:$0xff]
    %v1912 = vld [vmem:[%s21 + $0xb8] sm:$0xff]
    %v1913 = vld [vmem:[%s21 + $0xc0] sm:$0xff]
    %v1914 = vld [vmem:[%s21 + $0xc8] sm:$0xff]
    %v1915 = vld [vmem:[%s21 + $0xd0] sm:$0xff]
    %v1916 = vld [vmem:[%s21 + $0xd8] sm:$0xff]
    %v1917 = vld [vmem:[%s21 + $0xe0] sm:$0xff]
    %v1918 = vld [vmem:[%s21 + $0xe8] sm:$0xff]
    %v1919 = vld [vmem:[%s21 + $0xf0] sm:$0xff]
    %v1920 = vld [vmem:[%s21 + $0xf8] sm:$0xff]
    %v1921 = vld [vmem:[%s22] sm:$0x1]
    %v1923 = vlaneseq
    %v1924 = vshrl.u32 %v1923, 7
    %v1925 = vsub.s32 0, %v1924
    %v1926 = vrot.slane %v1921, %v1925
    %1928 = vmatprep.subr.mxu0 0.0
    %1929 = vmatpush1.msra.mxu0 %v1889
    %1930 = vmatprep.subr.mxu0 0.0
    %1931 = vmatpush1.msra.mxu0 %v1890
    %1932 = vmatprep.subr.mxu0 0.0
    %1933 = vmatpush1.msra.mxu0 %v1891
    %1934 = vmatprep.subr.mxu0 0.0
    %1935 = vmatpush1.msra.mxu0 %v1892
    %1936 = vmatprep.subr.mxu0 0.0
    %1937 = vmatpush1.msra.mxu0 %v1893
    %1938 = vmatprep.subr.mxu0 0.0
    %1939 = vmatpush1.msra.mxu0 %v1894
    %1940 = vmatprep.subr.mxu0 0.0
    %1941 = vmatpush1.msra.mxu0 %v1895
    %1942 = vmatprep.subr.mxu0 0.0
    %1943 = vmatpush1.msra.mxu0 %v1896
    %1944 = vmatprep.subr.mxu0 0.0
    %1945 = vmatpush1.msra.mxu0 %v1897
    %1946 = vmatprep.subr.mxu0 0.0
    %1947 = vmatpush1.msra.mxu0 %v1898
    %1948 = vmatprep.subr.mxu0 0.0
    %1949 = vmatpush1.msra.mxu0 %v1899
    %1950 = vmatprep.subr.mxu0 0.0
    %1951 = vmatpush1.msra.mxu0 %v1900
    %1952 = vmatprep.subr.mxu0 0.0
    %1953 = vmatpush1.msra.mxu0 %v1901
    %1954 = vmatprep.subr.mxu0 0.0
    %1955 = vmatpush1.msra.mxu0 %v1902
    %1956 = vmatprep.subr.mxu0 0.0
    %1957 = vmatpush1.msra.mxu0 %v1903
    %1958 = vmatprep.subr.mxu0 0.0
    %1959 = vmatpush1.msra.mxu0 %v1904
    %1960 = vmatprep.subr.mxu0 0.0
    %1961 = vmatpush1.msra.mxu0 %v1905
    %1962 = vmatprep.subr.mxu0 0.0
    %1963 = vmatpush1.msra.mxu0 %v1906
    %1964 = vmatprep.subr.mxu0 0.0
    %1965 = vmatpush1.msra.mxu0 %v1907
    %1966 = vmatprep.subr.mxu0 0.0
    %1967 = vmatpush1.msra.mxu0 %v1908
    %1968 = vmatprep.subr.mxu0 0.0
    %1969 = vmatpush1.msra.mxu0 %v1909
    %1970 = vmatprep.subr.mxu0 0.0
    %1971 = vmatpush1.msra.mxu0 %v1910
    %1972 = vmatprep.subr.mxu0 0.0
    %1973 = vmatpush1.msra.mxu0 %v1911
    %1974 = vmatprep.subr.mxu0 0.0
    %1975 = vmatpush1.msra.mxu0 %v1912
    %1976 = vmatprep.subr.mxu0 0.0
    %1977 = vmatpush1.msra.mxu0 %v1913
    %1978 = vmatprep.subr.mxu0 0.0
    %1979 = vmatpush1.msra.mxu0 %v1914
    %1980 = vmatprep.subr.mxu0 0.0
    %1981 = vmatpush1.msra.mxu0 %v1915
    %1982 = vmatprep.subr.mxu0 0.0
    %1983 = vmatpush1.msra.mxu0 %v1916
    %1984 = vmatprep.subr.mxu0 0.0
    %1985 = vmatpush1.msra.mxu0 %v1917
    %1986 = vmatprep.subr.mxu0 0.0
    %1987 = vmatpush1.msra.mxu0 %v1918
    %1988 = vmatprep.subr.mxu0 0.0
    %1989 = vmatpush1.msra.mxu0 %v1919
    %1990 = vmatprep.subr.mxu0 0.0
    %1991 = vmatpush1.msra.mxu0 %v1920
    %1992 = vmatprep.mubr.f32.mxu0 %v1888
    %1993 = vmatmul.mubr.f32.gmra.mrb[0].mxu0 %v1887
    %v1994 = vpop.f32.mrb[0].mxu0
    %v1995 = vadd.f32 %v1926, %v1994
    %v1996 = vpop.f32.mrb[0].mxu0
    %1997 = vdwg.mxu0
    %v1998 = vmax.f32 %v1995, 0.0
    %v1999 = vld [vmem:[%s23] sm:$0xff]
    %v2000 = vld [vmem:[%s23 + $0x8] sm:$0xff]
    %v2001 = vld [vmem:[%s23 + $0x10] sm:$0xff]
    %v2002 = vld [vmem:[%s23 + $0x18] sm:$0xff]
    %v2003 = vld [vmem:[%s24] sm:$0x1]
    %v2005 = vlaneseq
    %v2006 = vshrl.u32 %v2005, 7
    %v2007 = vsub.s32 0, %v2006
    %v2008 = vrot.slane %v2003, %v2007
    %v2011 = vsel %vm222, %v1998, 0
    %2013 = vmatprep.subr.mxu0 0.0
    %2014 = vmatpush1.msra.mxu0 %v1999
    %2015 = vmatprep.subr.mxu0 0.0
    %2016 = vmatpush1.msra.mxu0 %v2000
    %2017 = vmatprep.subr.mxu0 0.0
    %2018 = vmatpush1.msra.mxu0 %v2001
    %2019 = vmatprep.subr.mxu0 0.0
    %2020 = vmatpush1.msra.mxu0 %v2002
    %2021 = vmatprep.subr.mxu0 0.0
    %2022 = vmatpush1.msra.mxu0 0.0
    %2023 = vmatprep.subr.mxu0 0.0
    %2024 = vmatpush1.msra.mxu0 0.0
    %2025 = vmatprep.subr.mxu0 0.0
    %2026 = vmatpush1.msra.mxu0 0.0
    %2027 = vmatprep.subr.mxu0 0.0
    %2028 = vmatpush1.msra.mxu0 0.0
    %2029 = vmatprep.subr.mxu0 0.0
    %2030 = vmatpush1.msra.mxu0 0.0
    %2031 = vmatprep.subr.mxu0 0.0
    %2032 = vmatpush1.msra.mxu0 0.0
    %2033 = vmatprep.subr.mxu0 0.0
    %2034 = vmatpush1.msra.mxu0 0.0
    %2035 = vmatprep.subr.mxu0 0.0
    %2036 = vmatpush1.msra.mxu0 0.0
    %2037 = vmatprep.subr.mxu0 0.0
    %2038 = vmatpush1.msra.mxu0 0.0
    %2039 = vmatprep.subr.mxu0 0.0
    %2040 = vmatpush1.msra.mxu0 0.0
    %2041 = vmatprep.subr.mxu0 0.0
    %2042 = vmatpush1.msra.mxu0 0.0
    %2043 = vmatprep.subr.mxu0 0.0
    %2044 = vmatpush1.msra.mxu0 0.0
    %2045 = vmatprep.subr.mxu0 0.0
    %2046 = vmatpush1.msra.mxu0 0.0
    %2047 = vmatprep.subr.mxu0 0.0
    %2048 = vmatpush1.msra.mxu0 0.0
    %2049 = vmatprep.subr.mxu0 0.0
    %2050 = vmatpush1.msra.mxu0 0.0
    %2051 = vmatprep.subr.mxu0 0.0
    %2052 = vmatpush1.msra.mxu0 0.0
    %2053 = vmatprep.subr.mxu0 0.0
    %2054 = vmatpush1.msra.mxu0 0.0
    %2055 = vmatprep.subr.mxu0 0.0
    %2056 = vmatpush1.msra.mxu0 0.0
    %2057 = vmatprep.subr.mxu0 0.0
    %2058 = vmatpush1.msra.mxu0 0.0
    %2059 = vmatprep.subr.mxu0 0.0
    %2060 = vmatpush1.msra.mxu0 0.0
    %2061 = vmatprep.subr.mxu0 0.0
    %2062 = vmatpush1.msra.mxu0 0.0
    %2063 = vmatprep.subr.mxu0 0.0
    %2064 = vmatpush1.msra.mxu0 0.0
    %2065 = vmatprep.subr.mxu0 0.0
    %2066 = vmatpush1.msra.mxu0 0.0
    %2067 = vmatprep.subr.mxu0 0.0
    %2068 = vmatpush1.msra.mxu0 0.0
    %2069 = vmatprep.subr.mxu0 0.0
    %2070 = vmatpush1.msra.mxu0 0.0
    %2071 = vmatprep.subr.mxu0 0.0
    %2072 = vmatpush1.msra.mxu0 0.0
    %2073 = vmatprep.subr.mxu0 0.0
    %2074 = vmatpush1.msra.mxu0 0.0
    %2075 = vmatprep.subr.mxu0 0.0
    %2076 = vmatpush1.msra.mxu0 0.0
    %2077 = vmatprep.mubr.f32.mxu0 0.0
    %2078 = vmatmul.mubr.f32.gmra.mrb[0].mxu0 %v2011
    %v2079 = vpop.f32.mrb[0].mxu0
    %v2080 = vadd.f32 %v2008, %v2079
    %v2081 = vpop.f32.mrb[0].mxu0
    %2082 = vdwg.mxu0
    %vm2083 = vcmask 17408
    %2084 = vst.msk [vmem:[#allocation6] sm:$0x3] %vm2083, %v2080
    // Predicated region
    $region102: #{adin_forward.1} parent=1 // pred_check
      _
    $region103: #{adin_forward.1} parent=1 // pred_check_branch
      %2086 = sbr.rel (0) target = $region105
    $region104: #{adin_forward.1} parent=1 // pred_region
      %s2088 = ssub.s32 32, 32
      %2089 = vsyncadd [#allocation7], %s2088
      %s2091 = sshll.u32 [#allocation6], 4
      %s2092 = int_to_ptr.vmem [resolvable:$true] %s2091
      %2094 = dma.vmem_to_hbm [thread:$0]  %s2092, 32, %s25, [#allocation7]
    $region105: #{adin_forward.1} parent=1 // pred_fallthru
      _
    // Predicated region
    $region106: #{adin_forward.1} parent=1 // pred_check
      _
    $region107: #{adin_forward.1} parent=1 // pred_check_branch
      %2096 = sbr.rel (0) target = $region109
    $region108: #{adin_forward.1} parent=1 // pred_region
      %2097 = dma.done [#allocation7], 32
    $region109: #{adin_forward.1} parent=1 // pred_fallthru
      _
    %2098 = vsyncpa [#allocation7], 1

</llo_original>
